<compile_context>
chip_gen: v5e
topology: v5e:2x2
jax: 0.10.0
libtpu: 0.0.40
codegen_flags: <defaults>
</compile_context>

<pallas_src>
import jax
import jax.numpy as jnp
import numpy as np
from jax.experimental import pallas as pl
from jax.experimental.pallas import tpu as pltpu


# ----------------------------- MADE mask utilities (glue, plain numpy) -------

def _get_input_degrees(in_features):
    return np.arange(1, in_features + 1)


def _hidden_mask_and_degrees(in_degrees, out_features, autoregressive_features):
    max_ = max(1, autoregressive_features - 1)
    min_ = min(1, autoregressive_features - 1)
    out_degrees = np.arange(out_features) % max_ + min_
    mask = (out_degrees[..., None] >= in_degrees).astype(np.float32)   # (out, in)
    return mask, out_degrees


def _output_mask(in_degrees, out_features, autoregressive_features, out_degrees_):
    # torch `tile(x, n)` == np.repeat(x, n) (consecutive element repeat)
    out_degrees = np.repeat(np.asarray(out_degrees_).reshape(-1),
                            out_features // autoregressive_features)
    mask = (out_degrees[..., None] > in_degrees).astype(np.float32)    # (out, in)
    return mask


# ----------------------------- Pallas kernel ---------------------------------

def _make_made_kernel(num_blocks):
    """Fused residual ConditionalMADE forward on one (features, tile_b) slab."""

    def kernel(*refs):
        x_ref, c_ref = refs[0], refs[1]
        o_ref = refs[-1]
        w = refs[2:-1]
        w0, b0, wc1, bc1, wc2, bc2 = w[0], w[1], w[2], w[3], w[4], w[5]
        blk = w[6:6 + 6 * num_blocks]
        wf, bf = w[6 + 6 * num_blocks], w[7 + 6 * num_blocks]

        bf16 = jnp.bfloat16
        x = x_ref[...]                                           # (F, tb) bf16
        c = c_ref[...]                                           # (C, tb) bf16

        # initial masked linear (no activation)
        h = jnp.dot(w0[...], x, preferred_element_type=jnp.float32) + b0[...]

        # context MLP add: Linear(C,32) -> ReLU -> Linear(32,H)
        cm = jnp.maximum(
            jnp.dot(wc1[...], c, preferred_element_type=jnp.float32) + bc1[...], 0.0)
        h = h + jnp.dot(wc2[...], cm.astype(bf16),
                        preferred_element_type=jnp.float32) + bc2[...]

        # masked residual blocks (relu -> lin0 -> relu -> lin1 -> GLU gate -> add)
        for b in range(num_blocks):
            wa, ba, wb, bb, wg, bg = blk[6 * b:6 * b + 6]
            t = jnp.maximum(h, 0.0)
            t = jnp.dot(wa[...], t.astype(bf16),
                        preferred_element_type=jnp.float32) + ba[...]
            t = jnp.maximum(t, 0.0)                              # dropout p=0
            t = jnp.dot(wb[...], t.astype(bf16),
                        preferred_element_type=jnp.float32) + bb[...]
            g = jnp.dot(wg[...], c, preferred_element_type=jnp.float32) + bg[...]
            t = t * (1.0 / (1.0 + jnp.exp(-g)))                  # GLU gating (EUP)
            h = h + t

        # final masked linear (is_output=True)
        out = jnp.dot(wf[...], h.astype(bf16),
                      preferred_element_type=jnp.float32) + bf[...]
        o_ref[...] = out.astype(o_ref.dtype)

    return kernel


def _round_up(a, m):
    return ((a + m - 1) // m) * m


def conditional_made_forward(x, context, params, *, tile_b=512):
    """x: (B, F) f32, context: (B, C) f32. params: pre-masked bf16 (out, in)
    weights, f32 (out, 1) biases. Returns (B, F*output_multiplier) f32."""
    B, F = x.shape
    C = context.shape[1]
    num_blocks = len(params["wa"])
    O = params["wf"].shape[0]

    LANE = 128
    # Lane-dense batch tiling: tile is a multiple of 128 so output stores are
    # unmasked and every vreg lane does useful work.
    b128 = _round_up(B, LANE)
    tb = max(LANE, min(_round_up(tile_b, LANE), b128))
    # Megacore: prefer >= 2 parallel grid steps when the batch allows it.
    if b128 // tb < 2 and b128 >= 2 * LANE:
        tb = max(LANE, ((b128 // 2) // LANE) * LANE)
    B_pad = _round_up(b128, tb)

    # Transpose once in the wrapper (layout plumbing, not compute); padded
    # batch columns are independent and sliced off below.
    xT = jnp.zeros((F, B_pad), jnp.bfloat16).at[:, :B].set(x.T.astype(jnp.bfloat16))
    cT = jnp.zeros((C, B_pad), jnp.bfloat16).at[:, :B].set(
        context.T.astype(jnp.bfloat16))

    weights = [params["w0"], params["b0"], params["wc1"], params["bc1"],
               params["wc2"], params["bc2"]]
    for b in range(num_blocks):
        weights += [params["wa"][b], params["ba"][b], params["wb"][b],
                    params["bb"][b], params["wg"][b], params["bg"][b]]
    weights += [params["wf"], params["bf"]]

    def const_spec(shape):
        # Constant-index blocks: DMA'd once, negligible VMEM at these sizes.
        return pl.BlockSpec(shape, lambda i: (0, 0))

    in_specs = [pl.BlockSpec((F, tb), lambda i: (0, i)),     # xT
                pl.BlockSpec((C, tb), lambda i: (0, i))]     # contextT
    in_specs += [const_spec(w.shape) for w in weights]
    out_spec = pl.BlockSpec((O, tb), lambda i: (0, i))

    grid = (B_pad // tb,)

    outT = pl.pallas_call(
        _make_made_kernel(num_blocks),
        out_shape=jax.ShapeDtypeStruct((O, B_pad), jnp.float32),
        grid_spec=pltpu.PrefetchScalarGridSpec(
            num_scalar_prefetch=0,
            grid=grid,
            in_specs=in_specs,
            out_specs=out_spec,
        ),
        compiler_params=pltpu.CompilerParams(
            dimension_semantics=("parallel",)),
    )(xT, cT, *weights)

    return outT[:, :B].T                                       # back to (B, O)


# ----------------------------- parameter construction ------------------------

def init_made_params(key, features, hidden_features, context_features,
                     num_blocks, output_multiplier, init_identity=False):
    """Deterministic init matching the module's shapes/masks. Weights are
    pre-masked, kept in native (out, in) layout, cast to bf16 for the MXU."""
    F, H, C = features, hidden_features, context_features
    O = F * output_multiplier

    in_deg = _get_input_degrees(F)
    m0, deg = _hidden_mask_and_degrees(in_deg, H, F)            # (H, F)
    block_masks = []
    for _ in range(num_blocks):
        ma, dega = _hidden_mask_and_degrees(deg, H, F)          # (H, H)
        mb, degb = _hidden_mask_and_degrees(dega, H, F)         # (H, H)
        block_masks.append((ma, mb))
        deg = degb
    mf = _output_mask(deg, O, F, in_deg)                        # (O, H)

    def linear_init(k, out_f, in_f, bound=None):
        if bound is None:
            bound = 1.0 / np.sqrt(in_f)
        kw, kb = jax.random.split(k)
        w = jax.random.uniform(kw, (out_f, in_f), jnp.float32, -bound, bound)
        b = jax.random.uniform(kb, (out_f,), jnp.float32, -bound, bound)
        return w, b

    keys = iter(jax.random.split(key, 4 + 3 * num_blocks))

    w0, b0 = linear_init(next(keys), H, F)
    wc1, bc1 = linear_init(next(keys), 32, C)                   # mlp.MLP([C,32,H])
    wc2, bc2 = linear_init(next(keys), H, 32)

    wa_l, ba_l, wb_l, bb_l, wg_l, bg_l = [], [], [], [], [], []
    for blk in range(num_blocks):
        ma, mb = block_masks[blk]
        wa, ba = linear_init(next(keys), H, H)
        # zero_initialization=True: last masked linear ~ U(-1e-3, 1e-3)
        wb, bb = linear_init(next(keys), H, H, bound=1e-3)
        wg, bg = linear_init(next(keys), H, C)                  # context gate Linear
        wa_l.append((wa * jnp.asarray(ma)).astype(jnp.bfloat16))
        ba_l.append(ba[:, None])
        wb_l.append((wb * jnp.asarray(mb)).astype(jnp.bfloat16))
        bb_l.append(bb[:, None])
        wg_l.append(wg.astype(jnp.bfloat16))
        bg_l.append(bg[:, None])

    wf, bf = linear_init(next(keys), O, H)
    if init_identity:
        min_derivative = 1e-3                                   # splines default
        wf = jnp.zeros_like(wf)
        bf = jnp.full_like(bf, float(np.log(np.exp(1.0 - min_derivative) - 1.0)))

    params = {
        "w0": (w0 * jnp.asarray(m0)).astype(jnp.bfloat16), "b0": b0[:, None],
        "wc1": wc1.astype(jnp.bfloat16), "bc1": bc1[:, None],
        "wc2": wc2.astype(jnp.bfloat16), "bc2": bc2[:, None],
        "wa": wa_l, "ba": ba_l, "wb": wb_l, "bb": bb_l, "wg": wg_l, "bg": bg_l,
        "wf": (wf * jnp.asarray(mf)).astype(jnp.bfloat16), "bf": bf[:, None],
    }
    return params


# ----------------------------- references ------------------------------------

def made_reference(x, context, params):
    """Precision-matched pure-JAX reference (bf16 MXU inputs, f32 accum)."""
    bf16 = jnp.bfloat16

    def mm(w, a):
        return jnp.dot(w, a.astype(bf16), preferred_element_type=jnp.float32)

    xT, cT = x.T, context.T
    h = mm(params["w0"], xT) + params["b0"]
    cm = jnp.maximum(mm(params["wc1"], cT) + params["bc1"], 0.0)
    h = h + mm(params["wc2"], cm) + params["bc2"]
    for b in range(len(params["wa"])):
        t = jnp.maximum(h, 0.0)
        t = mm(params["wa"][b], t) + params["ba"][b]
        t = jnp.maximum(t, 0.0)
        t = mm(params["wb"][b], t) + params["bb"][b]
        g = mm(params["wg"][b], cT) + params["bg"][b]
        h = h + t * (1.0 / (1.0 + jnp.exp(-g)))
    out = mm(params["wf"], h) + params["bf"]
    return out.T                                                 # (B, O)


def made_reference_f32(x, context, params):
    """Full-f32 forward (bf16 weights upcast); loose sanity check on the
    bf16-activation precision choice."""
    def lin(h, w, b):
        return h @ w.astype(jnp.float32).T + b[:, 0]

    h = lin(x, params["w0"], params["b0"])
    h = h + lin(jnp.maximum(lin(context, params["wc1"], params["bc1"]), 0.0),
                params["wc2"], params["bc2"])
    for b in range(len(params["wa"])):
        t = jnp.maximum(h, 0.0)
        t = lin(t, params["wa"][b], params["ba"][b])
        t = jnp.maximum(t, 0.0)
        t = lin(t, params["wb"][b], params["bb"][b])
        gate = jax.nn.sigmoid(lin(context, params["wg"][b], params["bg"][b]))
        h = h + t * gate
    return lin(h, params["wf"], params["bf"])


# ----------------------------- main ------------------------------------------

if __name__ == "__main__":
    # Small shapes consistent with AutoregressiveRQSpline(num_input_channels=4,
    # num_blocks=2, num_hidden_channels=32, context_features=8, num_bins=32).
    # Batch deliberately NOT a multiple of the tile to exercise padding.
    batch = 300
    num_input_channels = 4
    num_hidden_channels = 32
    context_features = 8
    num_blocks = 2
    num_bins = 32
    output_multiplier = 3 * num_bins - 1          # tails='linear'

    key = jax.random.PRNGKey(0)
    kx, kc, kp = jax.random.split(key, 3)

    x = jax.random.normal(kx, (batch, num_input_channels), dtype=jnp.float32)
    context = jax.random.normal(kc, (batch, context_features), dtype=jnp.float32)
    # init_identity=False so the final layer is non-trivial and actually
    # exercised numerically (the module's init_identity=True path — zero final
    # weights — is also supported via the flag).
    params = init_made_params(kp, num_input_channels, num_hidden_channels,
                              context_features, num_blocks, output_multiplier,
                              init_identity=False)

    out = conditional_made_forward(x, context, params)
    out = jax.block_until_ready(out)

    # precision-matched correctness check
    ref = made_reference(x, context, params)
    np.testing.assert_allclose(np.asarray(out), np.asarray(ref),
                               rtol=1e-3, atol=1e-3)

    # loose sanity check against a full-f32 forward
    ref32 = made_reference_f32(x, context, params)
    np.testing.assert_allclose(np.asarray(out), np.asarray(ref32),
                               rtol=5e-2, atol=5e-2)

    print("KERNEL_OK")
</pallas_src>

<mosaic_0001>
module attributes {stable_mosaic.version = 11 : i64} {
  func.func @kernel(%arg0: i32, %arg1: memref<4x128xbf16, #tpu.memory_space<vmem>>, %arg2: memref<8x128xbf16, #tpu.memory_space<vmem>>, %arg3: memref<32x4xbf16, #tpu.memory_space<vmem>>, %arg4: memref<32x1xf32, #tpu.memory_space<vmem>>, %arg5: memref<32x8xbf16, #tpu.memory_space<vmem>>, %arg6: memref<32x1xf32, #tpu.memory_space<vmem>>, %arg7: memref<32x32xbf16, #tpu.memory_space<vmem>>, %arg8: memref<32x1xf32, #tpu.memory_space<vmem>>, %arg9: memref<32x32xbf16, #tpu.memory_space<vmem>>, %arg10: memref<32x1xf32, #tpu.memory_space<vmem>>, %arg11: memref<32x32xbf16, #tpu.memory_space<vmem>>, %arg12: memref<32x1xf32, #tpu.memory_space<vmem>>, %arg13: memref<32x8xbf16, #tpu.memory_space<vmem>>, %arg14: memref<32x1xf32, #tpu.memory_space<vmem>>, %arg15: memref<32x32xbf16, #tpu.memory_space<vmem>>, %arg16: memref<32x1xf32, #tpu.memory_space<vmem>>, %arg17: memref<32x32xbf16, #tpu.memory_space<vmem>>, %arg18: memref<32x1xf32, #tpu.memory_space<vmem>>, %arg19: memref<32x8xbf16, #tpu.memory_space<vmem>>, %arg20: memref<32x1xf32, #tpu.memory_space<vmem>>, %arg21: memref<380x32xbf16, #tpu.memory_space<vmem>>, %arg22: memref<380x1xf32, #tpu.memory_space<vmem>>, %arg23: memref<380x128xf32, #tpu.memory_space<vmem>>) attributes {dimension_semantics = [#tpu.dimension_semantics<parallel>], iteration_bounds = array<i64: 3>, scalar_prefetch = 0 : i64, scratch_operands = 0 : i64, tpu.core_type = #tpu.core_type<tc>, window_params = [{transform_indices = @transform_0, window_bounds = array<i64: 4, 128>}, {transform_indices = @transform_1, window_bounds = array<i64: 8, 128>}, {pipeline_mode = #tpu.pipeline_mode<synchronous>, transform_indices = @transform_2, window_bounds = array<i64: 32, 4>}, {pipeline_mode = #tpu.pipeline_mode<synchronous>, transform_indices = @transform_3, window_bounds = array<i64: 32, 1>}, {pipeline_mode = #tpu.pipeline_mode<synchronous>, transform_indices = @transform_4, window_bounds = array<i64: 32, 8>}, {pipeline_mode = #tpu.pipeline_mode<synchronous>, transform_indices = @transform_5, window_bounds = array<i64: 32, 1>}, {pipeline_mode = #tpu.pipeline_mode<synchronous>, transform_indices = @transform_6, window_bounds = array<i64: 32, 32>}, {pipeline_mode = #tpu.pipeline_mode<synchronous>, transform_indices = @transform_7, window_bounds = array<i64: 32, 1>}, {pipeline_mode = #tpu.pipeline_mode<synchronous>, transform_indices = @transform_8, window_bounds = array<i64: 32, 32>}, {pipeline_mode = #tpu.pipeline_mode<synchronous>, transform_indices = @transform_9, window_bounds = array<i64: 32, 1>}, {pipeline_mode = #tpu.pipeline_mode<synchronous>, transform_indices = @transform_10, window_bounds = array<i64: 32, 32>}, {pipeline_mode = #tpu.pipeline_mode<synchronous>, transform_indices = @transform_11, window_bounds = array<i64: 32, 1>}, {pipeline_mode = #tpu.pipeline_mode<synchronous>, transform_indices = @transform_12, window_bounds = array<i64: 32, 8>}, {pipeline_mode = #tpu.pipeline_mode<synchronous>, transform_indices = @transform_13, window_bounds = array<i64: 32, 1>}, {pipeline_mode = #tpu.pipeline_mode<synchronous>, transform_indices = @transform_14, window_bounds = array<i64: 32, 32>}, {pipeline_mode = #tpu.pipeline_mode<synchronous>, transform_indices = @transform_15, window_bounds = array<i64: 32, 1>}, {pipeline_mode = #tpu.pipeline_mode<synchronous>, transform_indices = @transform_16, window_bounds = array<i64: 32, 32>}, {pipeline_mode = #tpu.pipeline_mode<synchronous>, transform_indices = @transform_17, window_bounds = array<i64: 32, 1>}, {pipeline_mode = #tpu.pipeline_mode<synchronous>, transform_indices = @transform_18, window_bounds = array<i64: 32, 8>}, {pipeline_mode = #tpu.pipeline_mode<synchronous>, transform_indices = @transform_19, window_bounds = array<i64: 32, 1>}, {pipeline_mode = #tpu.pipeline_mode<synchronous>, transform_indices = @transform_20, window_bounds = array<i64: 380, 32>}, {pipeline_mode = #tpu.pipeline_mode<synchronous>, transform_indices = @transform_21, window_bounds = array<i64: 380, 1>}, {transform_indices = @transform_22, window_bounds = array<i64: 380, 128>}]} {
    %c0 = arith.constant 0 : index
    %c0_0 = arith.constant 0 : index
    %0 = vector.load %arg1[%c0, %c0_0] : memref<4x128xbf16, #tpu.memory_space<vmem>>, vector<4x128xbf16>
    %c0_1 = arith.constant 0 : index
    %c0_2 = arith.constant 0 : index
    %1 = vector.load %arg2[%c0_1, %c0_2] : memref<8x128xbf16, #tpu.memory_space<vmem>>, vector<8x128xbf16>
    %c0_3 = arith.constant 0 : index
    %c0_4 = arith.constant 0 : index
    %2 = vector.load %arg3[%c0_3, %c0_4] : memref<32x4xbf16, #tpu.memory_space<vmem>>, vector<32x4xbf16>
    %cst = arith.constant dense<0.000000e+00> : vector<32x128xf32>
    %3 = tpu.matmul %2, %0, %cst {dimension_numbers = #tpu.dot_dimension_numbers<[1], [0], [0], [1], [0, 0, 1, 1], [], []>} : vector<32x4xbf16>, vector<4x128xbf16>, vector<32x128xf32> -> vector<32x128xf32>
    %c0_5 = arith.constant 0 : index
    %c0_6 = arith.constant 0 : index
    %4 = vector.load %arg4[%c0_5, %c0_6] : memref<32x1xf32, #tpu.memory_space<vmem>>, vector<32x1xf32>
    %5 = vector.broadcast %4 : vector<32x1xf32> to vector<32x128xf32>
    %6 = arith.addf %3, %5 : vector<32x128xf32>
    %c0_7 = arith.constant 0 : index
    %c0_8 = arith.constant 0 : index
    %7 = vector.load %arg5[%c0_7, %c0_8] : memref<32x8xbf16, #tpu.memory_space<vmem>>, vector<32x8xbf16>
    %cst_9 = arith.constant dense<0.000000e+00> : vector<32x128xf32>
    %8 = tpu.matmul %7, %1, %cst_9 {dimension_numbers = #tpu.dot_dimension_numbers<[1], [0], [0], [1], [0, 0, 1, 1], [], []>} : vector<32x8xbf16>, vector<8x128xbf16>, vector<32x128xf32> -> vector<32x128xf32>
    %c0_10 = arith.constant 0 : index
    %c0_11 = arith.constant 0 : index
    %9 = vector.load %arg6[%c0_10, %c0_11] : memref<32x1xf32, #tpu.memory_space<vmem>>, vector<32x1xf32>
    %10 = vector.broadcast %9 : vector<32x1xf32> to vector<32x128xf32>
    %11 = arith.addf %8, %10 : vector<32x128xf32>
    %cst_12 = arith.constant 0.000000e+00 : f32
    %12 = vector.broadcast %cst_12 : f32 to vector<32x128xf32>
    %13 = arith.maximumf %11, %12 : vector<32x128xf32>
    %c0_13 = arith.constant 0 : index
    %c0_14 = arith.constant 0 : index
    %14 = vector.load %arg7[%c0_13, %c0_14] : memref<32x32xbf16, #tpu.memory_space<vmem>>, vector<32x32xbf16>
    %15 = arith.truncf %13 : vector<32x128xf32> to vector<32x128xbf16>
    %cst_15 = arith.constant dense<0.000000e+00> : vector<32x128xf32>
    %16 = tpu.matmul %14, %15, %cst_15 {dimension_numbers = #tpu.dot_dimension_numbers<[1], [0], [0], [1], [0, 0, 1, 1], [], []>} : vector<32x32xbf16>, vector<32x128xbf16>, vector<32x128xf32> -> vector<32x128xf32>
    %17 = arith.addf %6, %16 : vector<32x128xf32>
    %c0_16 = arith.constant 0 : index
    %c0_17 = arith.constant 0 : index
    %18 = vector.load %arg8[%c0_16, %c0_17] : memref<32x1xf32, #tpu.memory_space<vmem>>, vector<32x1xf32>
    %19 = vector.broadcast %18 : vector<32x1xf32> to vector<32x128xf32>
    %20 = arith.addf %17, %19 : vector<32x128xf32>
    %cst_18 = arith.constant 0.000000e+00 : f32
    %21 = vector.broadcast %cst_18 : f32 to vector<32x128xf32>
    %22 = arith.maximumf %20, %21 : vector<32x128xf32>
    %c0_19 = arith.constant 0 : index
    %c0_20 = arith.constant 0 : index
    %23 = vector.load %arg9[%c0_19, %c0_20] : memref<32x32xbf16, #tpu.memory_space<vmem>>, vector<32x32xbf16>
    %24 = arith.truncf %22 : vector<32x128xf32> to vector<32x128xbf16>
    %cst_21 = arith.constant dense<0.000000e+00> : vector<32x128xf32>
    %25 = tpu.matmul %23, %24, %cst_21 {dimension_numbers = #tpu.dot_dimension_numbers<[1], [0], [0], [1], [0, 0, 1, 1], [], []>} : vector<32x32xbf16>, vector<32x128xbf16>, vector<32x128xf32> -> vector<32x128xf32>
    %c0_22 = arith.constant 0 : index
    %c0_23 = arith.constant 0 : index
    %26 = vector.load %arg10[%c0_22, %c0_23] : memref<32x1xf32, #tpu.memory_space<vmem>>, vector<32x1xf32>
    %27 = vector.broadcast %26 : vector<32x1xf32> to vector<32x128xf32>
    %28 = arith.addf %25, %27 : vector<32x128xf32>
    %cst_24 = arith.constant 0.000000e+00 : f32
    %29 = vector.broadcast %cst_24 : f32 to vector<32x128xf32>
    %30 = arith.maximumf %28, %29 : vector<32x128xf32>
    %c0_25 = arith.constant 0 : index
    %c0_26 = arith.constant 0 : index
    %31 = vector.load %arg11[%c0_25, %c0_26] : memref<32x32xbf16, #tpu.memory_space<vmem>>, vector<32x32xbf16>
    %32 = arith.truncf %30 : vector<32x128xf32> to vector<32x128xbf16>
    %cst_27 = arith.constant dense<0.000000e+00> : vector<32x128xf32>
    %33 = tpu.matmul %31, %32, %cst_27 {dimension_numbers = #tpu.dot_dimension_numbers<[1], [0], [0], [1], [0, 0, 1, 1], [], []>} : vector<32x32xbf16>, vector<32x128xbf16>, vector<32x128xf32> -> vector<32x128xf32>
    %c0_28 = arith.constant 0 : index
    %c0_29 = arith.constant 0 : index
    %34 = vector.load %arg12[%c0_28, %c0_29] : memref<32x1xf32, #tpu.memory_space<vmem>>, vector<32x1xf32>
    %35 = vector.broadcast %34 : vector<32x1xf32> to vector<32x128xf32>
    %36 = arith.addf %33, %35 : vector<32x128xf32>
    %c0_30 = arith.constant 0 : index
    %c0_31 = arith.constant 0 : index
    %37 = vector.load %arg13[%c0_30, %c0_31] : memref<32x8xbf16, #tpu.memory_space<vmem>>, vector<32x8xbf16>
    %cst_32 = arith.constant dense<0.000000e+00> : vector<32x128xf32>
    %38 = tpu.matmul %37, %1, %cst_32 {dimension_numbers = #tpu.dot_dimension_numbers<[1], [0], [0], [1], [0, 0, 1, 1], [], []>} : vector<32x8xbf16>, vector<8x128xbf16>, vector<32x128xf32> -> vector<32x128xf32>
    %c0_33 = arith.constant 0 : index
    %c0_34 = arith.constant 0 : index
    %39 = vector.load %arg14[%c0_33, %c0_34] : memref<32x1xf32, #tpu.memory_space<vmem>>, vector<32x1xf32>
    %40 = vector.broadcast %39 : vector<32x1xf32> to vector<32x128xf32>
    %41 = arith.addf %38, %40 : vector<32x128xf32>
    %cst_35 = arith.constant 0.000000e+00 : f32
    %42 = vector.broadcast %cst_35 : f32 to vector<32x128xf32>
    %43 = arith.subf %42, %41 : vector<32x128xf32>
    %44 = math.exp %43 : vector<32x128xf32>
    %cst_36 = arith.constant 1.000000e+00 : f32
    %45 = vector.broadcast %cst_36 : f32 to vector<32x128xf32>
    %46 = arith.addf %45, %44 : vector<32x128xf32>
    %cst_37 = arith.constant 1.000000e+00 : f32
    %47 = vector.broadcast %cst_37 : f32 to vector<32x128xf32>
    %48 = arith.divf %47, %46 : vector<32x128xf32>
    %49 = arith.mulf %36, %48 : vector<32x128xf32>
    %50 = arith.addf %20, %49 : vector<32x128xf32>
    %cst_38 = arith.constant 0.000000e+00 : f32
    %51 = vector.broadcast %cst_38 : f32 to vector<32x128xf32>
    %52 = arith.maximumf %50, %51 : vector<32x128xf32>
    %c0_39 = arith.constant 0 : index
    %c0_40 = arith.constant 0 : index
    %53 = vector.load %arg15[%c0_39, %c0_40] : memref<32x32xbf16, #tpu.memory_space<vmem>>, vector<32x32xbf16>
    %54 = arith.truncf %52 : vector<32x128xf32> to vector<32x128xbf16>
    %cst_41 = arith.constant dense<0.000000e+00> : vector<32x128xf32>
    %55 = tpu.matmul %53, %54, %cst_41 {dimension_numbers = #tpu.dot_dimension_numbers<[1], [0], [0], [1], [0, 0, 1, 1], [], []>} : vector<32x32xbf16>, vector<32x128xbf16>, vector<32x128xf32> -> vector<32x128xf32>
    %c0_42 = arith.constant 0 : index
    %c0_43 = arith.constant 0 : index
    %56 = vector.load %arg16[%c0_42, %c0_43] : memref<32x1xf32, #tpu.memory_space<vmem>>, vector<32x1xf32>
    %57 = vector.broadcast %56 : vector<32x1xf32> to vector<32x128xf32>
    %58 = arith.addf %55, %57 : vector<32x128xf32>
    %cst_44 = arith.constant 0.000000e+00 : f32
    %59 = vector.broadcast %cst_44 : f32 to vector<32x128xf32>
    %60 = arith.maximumf %58, %59 : vector<32x128xf32>
    %c0_45 = arith.constant 0 : index
    %c0_46 = arith.constant 0 : index
    %61 = vector.load %arg17[%c0_45, %c0_46] : memref<32x32xbf16, #tpu.memory_space<vmem>>, vector<32x32xbf16>
    %62 = arith.truncf %60 : vector<32x128xf32> to vector<32x128xbf16>
    %cst_47 = arith.constant dense<0.000000e+00> : vector<32x128xf32>
    %63 = tpu.matmul %61, %62, %cst_47 {dimension_numbers = #tpu.dot_dimension_numbers<[1], [0], [0], [1], [0, 0, 1, 1], [], []>} : vector<32x32xbf16>, vector<32x128xbf16>, vector<32x128xf32> -> vector<32x128xf32>
    %c0_48 = arith.constant 0 : index
    %c0_49 = arith.constant 0 : index
    %64 = vector.load %arg18[%c0_48, %c0_49] : memref<32x1xf32, #tpu.memory_space<vmem>>, vector<32x1xf32>
    %65 = vector.broadcast %64 : vector<32x1xf32> to vector<32x128xf32>
    %66 = arith.addf %63, %65 : vector<32x128xf32>
    %c0_50 = arith.constant 0 : index
    %c0_51 = arith.constant 0 : index
    %67 = vector.load %arg19[%c0_50, %c0_51] : memref<32x8xbf16, #tpu.memory_space<vmem>>, vector<32x8xbf16>
    %cst_52 = arith.constant dense<0.000000e+00> : vector<32x128xf32>
    %68 = tpu.matmul %67, %1, %cst_52 {dimension_numbers = #tpu.dot_dimension_numbers<[1], [0], [0], [1], [0, 0, 1, 1], [], []>} : vector<32x8xbf16>, vector<8x128xbf16>, vector<32x128xf32> -> vector<32x128xf32>
    %c0_53 = arith.constant 0 : index
    %c0_54 = arith.constant 0 : index
    %69 = vector.load %arg20[%c0_53, %c0_54] : memref<32x1xf32, #tpu.memory_space<vmem>>, vector<32x1xf32>
    %70 = vector.broadcast %69 : vector<32x1xf32> to vector<32x128xf32>
    %71 = arith.addf %68, %70 : vector<32x128xf32>
    %cst_55 = arith.constant 0.000000e+00 : f32
    %72 = vector.broadcast %cst_55 : f32 to vector<32x128xf32>
    %73 = arith.subf %72, %71 : vector<32x128xf32>
    %74 = math.exp %73 : vector<32x128xf32>
    %cst_56 = arith.constant 1.000000e+00 : f32
    %75 = vector.broadcast %cst_56 : f32 to vector<32x128xf32>
    %76 = arith.addf %75, %74 : vector<32x128xf32>
    %cst_57 = arith.constant 1.000000e+00 : f32
    %77 = vector.broadcast %cst_57 : f32 to vector<32x128xf32>
    %78 = arith.divf %77, %76 : vector<32x128xf32>
    %79 = arith.mulf %66, %78 : vector<32x128xf32>
    %80 = arith.addf %50, %79 : vector<32x128xf32>
    %c0_58 = arith.constant 0 : index
    %c0_59 = arith.constant 0 : index
    %81 = vector.load %arg21[%c0_58, %c0_59] : memref<380x32xbf16, #tpu.memory_space<vmem>>, vector<380x32xbf16>
    %82 = arith.truncf %80 : vector<32x128xf32> to vector<32x128xbf16>
    %cst_60 = arith.constant dense<0.000000e+00> : vector<380x128xf32>
    %83 = tpu.matmul %81, %82, %cst_60 {dimension_numbers = #tpu.dot_dimension_numbers<[1], [0], [0], [1], [0, 0, 1, 1], [], []>} : vector<380x32xbf16>, vector<32x128xbf16>, vector<380x128xf32> -> vector<380x128xf32>
    %c0_61 = arith.constant 0 : index
    %c0_62 = arith.constant 0 : index
    %84 = vector.load %arg22[%c0_61, %c0_62] : memref<380x1xf32, #tpu.memory_space<vmem>>, vector<380x1xf32>
    %85 = vector.broadcast %84 : vector<380x1xf32> to vector<380x128xf32>
    %86 = arith.addf %83, %85 : vector<380x128xf32>
    %c0_63 = arith.constant 0 : index
    %c0_64 = arith.constant 0 : index
    %87 = vector.load %arg23[%c0_63, %c0_64] : memref<380x128xf32, #tpu.memory_space<vmem>>, vector<380x128xf32>
    tpu.vector_store %arg23[%c0_63, %c0_64], %86 {strides = array<i32>} : memref<380x128xf32, #tpu.memory_space<vmem>>, vector<380x128xf32>,
    return
  }
  func.func @transform_0(%arg0: i32) -> (i32, i32) {
    %c0_i32 = arith.constant 0 : i32
    %c0_i32_0 = arith.constant 0 : i32
    return %c0_i32, %arg0 : i32, i32
  }
  func.func @transform_1(%arg0: i32) -> (i32, i32) {
    %c0_i32 = arith.constant 0 : i32
    %c0_i32_0 = arith.constant 0 : i32
    return %c0_i32, %arg0 : i32, i32
  }
  func.func @transform_2(%arg0: i32) -> (i32, i32) {
    %c0_i32 = arith.constant 0 : i32
    %c0_i32_0 = arith.constant 0 : i32
    %c0_i32_1 = arith.constant 0 : i32
    return %c0_i32, %c0_i32_0 : i32, i32
  }
  func.func @transform_3(%arg0: i32) -> (i32, i32) {
    %c0_i32 = arith.constant 0 : i32
    %c0_i32_0 = arith.constant 0 : i32
    %c0_i32_1 = arith.constant 0 : i32
    return %c0_i32, %c0_i32_0 : i32, i32
  }
  func.func @transform_4(%arg0: i32) -> (i32, i32) {
    %c0_i32 = arith.constant 0 : i32
    %c0_i32_0 = arith.constant 0 : i32
    %c0_i32_1 = arith.constant 0 : i32
    return %c0_i32, %c0_i32_0 : i32, i32
  }
  func.func @transform_5(%arg0: i32) -> (i32, i32) {
    %c0_i32 = arith.constant 0 : i32
    %c0_i32_0 = arith.constant 0 : i32
    %c0_i32_1 = arith.constant 0 : i32
    return %c0_i32, %c0_i32_0 : i32, i32
  }
  func.func @transform_6(%arg0: i32) -> (i32, i32) {
    %c0_i32 = arith.constant 0 : i32
    %c0_i32_0 = arith.constant 0 : i32
    %c0_i32_1 = arith.constant 0 : i32
    return %c0_i32, %c0_i32_0 : i32, i32
  }
  func.func @transform_7(%arg0: i32) -> (i32, i32) {
    %c0_i32 = arith.constant 0 : i32
    %c0_i32_0 = arith.constant 0 : i32
    %c0_i32_1 = arith.constant 0 : i32
    return %c0_i32, %c0_i32_0 : i32, i32
  }
  func.func @transform_8(%arg0: i32) -> (i32, i32) {
    %c0_i32 = arith.constant 0 : i32
    %c0_i32_0 = arith.constant 0 : i32
    %c0_i32_1 = arith.constant 0 : i32
    return %c0_i32, %c0_i32_0 : i32, i32
  }
  func.func @transform_9(%arg0: i32) -> (i32, i32) {
    %c0_i32 = arith.constant 0 : i32
    %c0_i32_0 = arith.constant 0 : i32
    %c0_i32_1 = arith.constant 0 : i32
    return %c0_i32, %c0_i32_0 : i32, i32
  }
  func.func @transform_10(%arg0: i32) -> (i32, i32) {
    %c0_i32 = arith.constant 0 : i32
    %c0_i32_0 = arith.constant 0 : i32
    %c0_i32_1 = arith.constant 0 : i32
    return %c0_i32, %c0_i32_0 : i32, i32
  }
  func.func @transform_11(%arg0: i32) -> (i32, i32) {
    %c0_i32 = arith.constant 0 : i32
    %c0_i32_0 = arith.constant 0 : i32
    %c0_i32_1 = arith.constant 0 : i32
    return %c0_i32, %c0_i32_0 : i32, i32
  }
  func.func @transform_12(%arg0: i32) -> (i32, i32) {
    %c0_i32 = arith.constant 0 : i32
    %c0_i32_0 = arith.constant 0 : i32
    %c0_i32_1 = arith.constant 0 : i32
    return %c0_i32, %c0_i32_0 : i32, i32
  }
  func.func @transform_13(%arg0: i32) -> (i32, i32) {
    %c0_i32 = arith.constant 0 : i32
    %c0_i32_0 = arith.constant 0 : i32
    %c0_i32_1 = arith.constant 0 : i32
    return %c0_i32, %c0_i32_0 : i32, i32
  }
  func.func @transform_14(%arg0: i32) -> (i32, i32) {
    %c0_i32 = arith.constant 0 : i32
    %c0_i32_0 = arith.constant 0 : i32
    %c0_i32_1 = arith.constant 0 : i32
    return %c0_i32, %c0_i32_0 : i32, i32
  }
  func.func @transform_15(%arg0: i32) -> (i32, i32) {
    %c0_i32 = arith.constant 0 : i32
    %c0_i32_0 = arith.constant 0 : i32
    %c0_i32_1 = arith.constant 0 : i32
    return %c0_i32, %c0_i32_0 : i32, i32
  }
  func.func @transform_16(%arg0: i32) -> (i32, i32) {
    %c0_i32 = arith.constant 0 : i32
    %c0_i32_0 = arith.constant 0 : i32
    %c0_i32_1 = arith.constant 0 : i32
    return %c0_i32, %c0_i32_0 : i32, i32
  }
  func.func @transform_17(%arg0: i32) -> (i32, i32) {
    %c0_i32 = arith.constant 0 : i32
    %c0_i32_0 = arith.constant 0 : i32
    %c0_i32_1 = arith.constant 0 : i32
    return %c0_i32, %c0_i32_0 : i32, i32
  }
  func.func @transform_18(%arg0: i32) -> (i32, i32) {
    %c0_i32 = arith.constant 0 : i32
    %c0_i32_0 = arith.constant 0 : i32
    %c0_i32_1 = arith.constant 0 : i32
    return %c0_i32, %c0_i32_0 : i32, i32
  }
  func.func @transform_19(%arg0: i32) -> (i32, i32) {
    %c0_i32 = arith.constant 0 : i32
    %c0_i32_0 = arith.constant 0 : i32
    %c0_i32_1 = arith.constant 0 : i32
    return %c0_i32, %c0_i32_0 : i32, i32
  }
  func.func @transform_20(%arg0: i32) -> (i32, i32) {
    %c0_i32 = arith.constant 0 : i32
    %c0_i32_0 = arith.constant 0 : i32
    %c0_i32_1 = arith.constant 0 : i32
    return %c0_i32, %c0_i32_0 : i32, i32
  }
  func.func @transform_21(%arg0: i32) -> (i32, i32) {
    %c0_i32 = arith.constant 0 : i32
    %c0_i32_0 = arith.constant 0 : i32
    %c0_i32_1 = arith.constant 0 : i32
    return %c0_i32, %c0_i32_0 : i32, i32
  }
  func.func @transform_22(%arg0: i32) -> (i32, i32) {
    %c0_i32 = arith.constant 0 : i32
    %c0_i32_0 = arith.constant 0 : i32
    return %c0_i32, %arg0 : i32, i32
  }
}

</mosaic_0001>

<llo_original>
// kernel: tpu_custom_call.1
$region0: #{tpu_custom_call.1}
  #allocation0 [shape = 'u32[]', space=smem, size = 0x4, offset = 0x4, fixed_abs, tag = 'smem constant byte address 0x4 - core index']
  #allocation1 [shape = 'u32[72,128]{1,0:T(1,128)}', space=vmem, size = 0x9000, scoped, tag = 'internal scratch']
  %s0 = inlined_call_operand.vmem [shape: bf16[4,384], index: 0, kind: input, shape index: {}]
  %s1 = inlined_call_operand.vmem [shape: bf16[8,384], index: 1, kind: input, shape index: {}]
  %s2 = inlined_call_operand.vmem [shape: bf16[32,4], index: 2, kind: input, shape index: {}]
  %s3 = inlined_call_operand.vmem [shape: f32[32,1], index: 3, kind: input, shape index: {}]
  %s4 = inlined_call_operand.vmem [shape: bf16[32,8], index: 4, kind: input, shape index: {}]
  %s5 = inlined_call_operand.vmem [shape: f32[32,1], index: 5, kind: input, shape index: {}]
  %s6 = inlined_call_operand.vmem [shape: bf16[32,32], index: 6, kind: input, shape index: {}]
  %s7 = inlined_call_operand.vmem [shape: f32[32,1], index: 7, kind: input, shape index: {}]
  %s8 = inlined_call_operand.vmem [shape: bf16[32,32], index: 8, kind: input, shape index: {}]
  %s9 = inlined_call_operand.vmem [shape: f32[32,1], index: 9, kind: input, shape index: {}]
  %s10 = inlined_call_operand.vmem [shape: bf16[32,32], index: 10, kind: input, shape index: {}]
  %s11 = inlined_call_operand.vmem [shape: f32[32,1], index: 11, kind: input, shape index: {}]
  %s12 = inlined_call_operand.vmem [shape: bf16[32,8], index: 12, kind: input, shape index: {}]
  %s13 = inlined_call_operand.vmem [shape: f32[32,1], index: 13, kind: input, shape index: {}]
  %s14 = inlined_call_operand.vmem [shape: bf16[32,32], index: 14, kind: input, shape index: {}]
  %s15 = inlined_call_operand.vmem [shape: f32[32,1], index: 15, kind: input, shape index: {}]
  %s16 = inlined_call_operand.vmem [shape: bf16[32,32], index: 16, kind: input, shape index: {}]
  %s17 = inlined_call_operand.vmem [shape: f32[32,1], index: 17, kind: input, shape index: {}]
  %s18 = inlined_call_operand.vmem [shape: bf16[32,8], index: 18, kind: input, shape index: {}]
  %s19 = inlined_call_operand.vmem [shape: f32[32,1], index: 19, kind: input, shape index: {}]
  %s20 = inlined_call_operand.vmem [shape: bf16[380,32], index: 20, kind: input, shape index: {}]
  %s21 = inlined_call_operand.vmem [shape: f32[380,1], index: 21, kind: input, shape index: {}]
  %s22 = inlined_call_operand.hbm [shape: f32[380,384], index: 22, kind: output, shape index: {}]
  %s23 = sld [smem:[#allocation0]]
  $region121: #{tpu_custom_call.1} parent=0
    _
  %s25 = ssub.s32 1, %s23
  %s26 = scalar_select 0, %s25, %s23
  $region1: #{tpu_custom_call.1} parent=0
    #allocation2 [shape = 'u8[393216]{0}', space=vmem, size = 0x60000, scoped, tag = 'output window, operand 0']
    #allocation3 [shape = 's32[2]{0}', space=sflag, size = 0x8, scoped, tag = 'scoped memory for tpu_custom_call.1']
    %27 = vsyncpa [#allocation3], 0
    %s28 = scalar_lea.sflag [#allocation3], 1
    %29 = vsyncpa %s28, 0
    loop: start=0, step=1, limit=5
    $region2: #{tpu_custom_call.1} parent=1 // loop_pre_header
      _
    $region3: #{tpu_custom_call.1} parent=1 // loop_header
      %s31 = sphi 0, %s35
      %p32 = scmp.ge.s32.totalorder %s31, 5
      %s41 = sphi 0, %s43
      %s44 = sphi 0, %s41
      %s45 = sphi 0, %s44
      %s61 = sphi 0, %s45
      %s67 = sphi 0, %s69
      %s70 = sphi 0, %s67
      %s71 = sphi 0, %s70
      %s87 = sphi 0, %s71
      %s91 = sphi 0, %s91
      %s93 = sphi 0, %s91
      %s94 = sphi 0, %s93
      %s108 = sphi 0, %s94
      %s112 = sphi 0, %s112
      %s114 = sphi 0, %s112
      %s115 = sphi 0, %s114
      %s129 = sphi 0, %s115
      %s133 = sphi 0, %s133
      %s135 = sphi 0, %s133
      %s136 = sphi 0, %s135
      %s150 = sphi 0, %s136
      %s154 = sphi 0, %s154
      %s156 = sphi 0, %s154
      %s157 = sphi 0, %s156
      %s171 = sphi 0, %s157
      %s175 = sphi 0, %s175
      %s177 = sphi 0, %s175
      %s178 = sphi 0, %s177
      %s192 = sphi 0, %s178
      %s196 = sphi 0, %s196
      %s198 = sphi 0, %s196
      %s199 = sphi 0, %s198
      %s213 = sphi 0, %s199
      %s217 = sphi 0, %s217
      %s219 = sphi 0, %s217
      %s220 = sphi 0, %s219
      %s234 = sphi 0, %s220
      %s238 = sphi 0, %s238
      %s240 = sphi 0, %s238
      %s241 = sphi 0, %s240
      %s255 = sphi 0, %s241
      %s259 = sphi 0, %s259
      %s261 = sphi 0, %s259
      %s262 = sphi 0, %s261
      %s276 = sphi 0, %s262
      %s280 = sphi 0, %s280
      %s282 = sphi 0, %s280
      %s283 = sphi 0, %s282
      %s297 = sphi 0, %s283
      %s301 = sphi 0, %s301
      %s303 = sphi 0, %s301
      %s304 = sphi 0, %s303
      %s318 = sphi 0, %s304
      %s322 = sphi 0, %s322
      %s324 = sphi 0, %s322
      %s325 = sphi 0, %s324
      %s339 = sphi 0, %s325
      %s343 = sphi 0, %s343
      %s345 = sphi 0, %s343
      %s346 = sphi 0, %s345
      %s360 = sphi 0, %s346
      %s364 = sphi 0, %s364
      %s366 = sphi 0, %s364
      %s367 = sphi 0, %s366
      %s381 = sphi 0, %s367
      %s385 = sphi 0, %s385
      %s387 = sphi 0, %s385
      %s388 = sphi 0, %s387
      %s402 = sphi 0, %s388
      %s406 = sphi 0, %s406
      %s408 = sphi 0, %s406
      %s409 = sphi 0, %s408
      %s423 = sphi 0, %s409
      %s427 = sphi 0, %s427
      %s429 = sphi 0, %s427
      %s430 = sphi 0, %s429
      %s444 = sphi 0, %s430
      %s448 = sphi 0, %s448
      %s450 = sphi 0, %s448
      %s451 = sphi 0, %s450
      %s465 = sphi 0, %s451
      %s469 = sphi 0, %s469
      %s471 = sphi 0, %s469
      %s472 = sphi 0, %s471
      %s486 = sphi 0, %s472
      %s490 = sphi 0, %s490
      %s492 = sphi 0, %s490
      %s493 = sphi 0, %s492
      %s507 = sphi 0, %s493
      %s513 = sphi 0, %s515
      %s516 = sphi 0, %s513
      %s517 = sphi 0, %s516
      %s533 = sphi 0, %s517
    $region4: #{tpu_custom_call.1} parent=1 // loop_header_branch
      %34 = sbr.rel (%p32) target = $region8
    $region5: #{tpu_custom_call.1} parent=1 // loop_body
      %s36 = ssub.s32 %s31, 1
      %s37 = ssub.s32 %s31, 2
      %s38 = sadd.s32 %s31, 1
      %s39 = ssub.s32 %s31, %s38
      %p40 = scmp.eq.s32.totalorder %s39, 0
      %s42 = sadd.s32 %s41, 1
      %s43 = scalar_select %p40, %s41, %s42
      %p46 = pneg %p40
      %p47 = scmp.eq.s32.totalorder %s31, 2
      %p48 = por %p46, %p47
      %p49 = scmp.ne.s32.totalorder %s41, %s44
      %p50 = scmp.eq.s32.totalorder %s31, 0
      %p51 = por %p49, %p50
      %p52 = scmp.ne.s32.totalorder %s41, %s44
      %p53 = scmp.eq.s32.totalorder %s36, 2
      %p54 = por %p52, %p53
      %p55 = scmp.ne.s32.totalorder %s44, %s45
      %p56 = scmp.eq.s32.totalorder %s36, 0
      %p57 = por %p55, %p56
      %p58 = scmp.ne.s32.totalorder %s44, %s45
      %p59 = scmp.eq.s32.totalorder %s37, 2
      %p60 = por %p58, %p59
      %p62 = scmp.ne.s32.totalorder %s45, %s61
      %p63 = scmp.eq.s32.totalorder %s37, 0
      %p64 = por %p62, %p63
      %s65 = ssub.s32 %s31, %s38
      %p66 = scmp.eq.s32.totalorder %s65, 0
      %s68 = sadd.s32 %s67, 1
      %s69 = scalar_select %p66, %s67, %s68
      %p72 = pneg %p66
      %p73 = scmp.eq.s32.totalorder %s31, 2
      %p74 = por %p72, %p73
      %p75 = scmp.ne.s32.totalorder %s67, %s70
      %p76 = scmp.eq.s32.totalorder %s31, 0
      %p77 = por %p75, %p76
      %p78 = scmp.ne.s32.totalorder %s67, %s70
      %p79 = scmp.eq.s32.totalorder %s36, 2
      %p80 = por %p78, %p79
      %p81 = scmp.ne.s32.totalorder %s70, %s71
      %p82 = scmp.eq.s32.totalorder %s36, 0
      %p83 = por %p81, %p82
      %p84 = scmp.ne.s32.totalorder %s70, %s71
      %p85 = scmp.eq.s32.totalorder %s37, 2
      %p86 = por %p84, %p85
      %p88 = scmp.ne.s32.totalorder %s71, %s87
      %p89 = scmp.eq.s32.totalorder %s37, 0
      %p90 = por %p88, %p89
      %s92 = sadd.s32 %s91, 1
      %p95 = scmp.eq.s32.totalorder %s31, 2
      %p96 = scmp.ne.s32.totalorder %s91, %s93
      %p97 = scmp.eq.s32.totalorder %s31, 0
      %p98 = por %p96, %p97
      %p99 = scmp.ne.s32.totalorder %s91, %s93
      %p100 = scmp.eq.s32.totalorder %s36, 2
      %p101 = por %p99, %p100
      %p102 = scmp.ne.s32.totalorder %s93, %s94
      %p103 = scmp.eq.s32.totalorder %s36, 0
      %p104 = por %p102, %p103
      %p105 = scmp.ne.s32.totalorder %s93, %s94
      %p106 = scmp.eq.s32.totalorder %s37, 2
      %p107 = por %p105, %p106
      %p109 = scmp.ne.s32.totalorder %s94, %s108
      %p110 = scmp.eq.s32.totalorder %s37, 0
      %p111 = por %p109, %p110
      %s113 = sadd.s32 %s112, 1
      %p116 = scmp.eq.s32.totalorder %s31, 2
      %p117 = scmp.ne.s32.totalorder %s112, %s114
      %p118 = scmp.eq.s32.totalorder %s31, 0
      %p119 = por %p117, %p118
      %p120 = scmp.ne.s32.totalorder %s112, %s114
      %p121 = scmp.eq.s32.totalorder %s36, 2
      %p122 = por %p120, %p121
      %p123 = scmp.ne.s32.totalorder %s114, %s115
      %p124 = scmp.eq.s32.totalorder %s36, 0
      %p125 = por %p123, %p124
      %p126 = scmp.ne.s32.totalorder %s114, %s115
      %p127 = scmp.eq.s32.totalorder %s37, 2
      %p128 = por %p126, %p127
      %p130 = scmp.ne.s32.totalorder %s115, %s129
      %p131 = scmp.eq.s32.totalorder %s37, 0
      %p132 = por %p130, %p131
      %s134 = sadd.s32 %s133, 1
      %p137 = scmp.eq.s32.totalorder %s31, 2
      %p138 = scmp.ne.s32.totalorder %s133, %s135
      %p139 = scmp.eq.s32.totalorder %s31, 0
      %p140 = por %p138, %p139
      %p141 = scmp.ne.s32.totalorder %s133, %s135
      %p142 = scmp.eq.s32.totalorder %s36, 2
      %p143 = por %p141, %p142
      %p144 = scmp.ne.s32.totalorder %s135, %s136
      %p145 = scmp.eq.s32.totalorder %s36, 0
      %p146 = por %p144, %p145
      %p147 = scmp.ne.s32.totalorder %s135, %s136
      %p148 = scmp.eq.s32.totalorder %s37, 2
      %p149 = por %p147, %p148
      %p151 = scmp.ne.s32.totalorder %s136, %s150
      %p152 = scmp.eq.s32.totalorder %s37, 0
      %p153 = por %p151, %p152
      %s155 = sadd.s32 %s154, 1
      %p158 = scmp.eq.s32.totalorder %s31, 2
      %p159 = scmp.ne.s32.totalorder %s154, %s156
      %p160 = scmp.eq.s32.totalorder %s31, 0
      %p161 = por %p159, %p160
      %p162 = scmp.ne.s32.totalorder %s154, %s156
      %p163 = scmp.eq.s32.totalorder %s36, 2
      %p164 = por %p162, %p163
      %p165 = scmp.ne.s32.totalorder %s156, %s157
      %p166 = scmp.eq.s32.totalorder %s36, 0
      %p167 = por %p165, %p166
      %p168 = scmp.ne.s32.totalorder %s156, %s157
      %p169 = scmp.eq.s32.totalorder %s37, 2
      %p170 = por %p168, %p169
      %p172 = scmp.ne.s32.totalorder %s157, %s171
      %p173 = scmp.eq.s32.totalorder %s37, 0
      %p174 = por %p172, %p173
      %s176 = sadd.s32 %s175, 1
      %p179 = scmp.eq.s32.totalorder %s31, 2
      %p180 = scmp.ne.s32.totalorder %s175, %s177
      %p181 = scmp.eq.s32.totalorder %s31, 0
      %p182 = por %p180, %p181
      %p183 = scmp.ne.s32.totalorder %s175, %s177
      %p184 = scmp.eq.s32.totalorder %s36, 2
      %p185 = por %p183, %p184
      %p186 = scmp.ne.s32.totalorder %s177, %s178
      %p187 = scmp.eq.s32.totalorder %s36, 0
      %p188 = por %p186, %p187
      %p189 = scmp.ne.s32.totalorder %s177, %s178
      %p190 = scmp.eq.s32.totalorder %s37, 2
      %p191 = por %p189, %p190
      %p193 = scmp.ne.s32.totalorder %s178, %s192
      %p194 = scmp.eq.s32.totalorder %s37, 0
      %p195 = por %p193, %p194
      %s197 = sadd.s32 %s196, 1
      %p200 = scmp.eq.s32.totalorder %s31, 2
      %p201 = scmp.ne.s32.totalorder %s196, %s198
      %p202 = scmp.eq.s32.totalorder %s31, 0
      %p203 = por %p201, %p202
      %p204 = scmp.ne.s32.totalorder %s196, %s198
      %p205 = scmp.eq.s32.totalorder %s36, 2
      %p206 = por %p204, %p205
      %p207 = scmp.ne.s32.totalorder %s198, %s199
      %p208 = scmp.eq.s32.totalorder %s36, 0
      %p209 = por %p207, %p208
      %p210 = scmp.ne.s32.totalorder %s198, %s199
      %p211 = scmp.eq.s32.totalorder %s37, 2
      %p212 = por %p210, %p211
      %p214 = scmp.ne.s32.totalorder %s199, %s213
      %p215 = scmp.eq.s32.totalorder %s37, 0
      %p216 = por %p214, %p215
      %s218 = sadd.s32 %s217, 1
      %p221 = scmp.eq.s32.totalorder %s31, 2
      %p222 = scmp.ne.s32.totalorder %s217, %s219
      %p223 = scmp.eq.s32.totalorder %s31, 0
      %p224 = por %p222, %p223
      %p225 = scmp.ne.s32.totalorder %s217, %s219
      %p226 = scmp.eq.s32.totalorder %s36, 2
      %p227 = por %p225, %p226
      %p228 = scmp.ne.s32.totalorder %s219, %s220
      %p229 = scmp.eq.s32.totalorder %s36, 0
      %p230 = por %p228, %p229
      %p231 = scmp.ne.s32.totalorder %s219, %s220
      %p232 = scmp.eq.s32.totalorder %s37, 2
      %p233 = por %p231, %p232
      %p235 = scmp.ne.s32.totalorder %s220, %s234
      %p236 = scmp.eq.s32.totalorder %s37, 0
      %p237 = por %p235, %p236
      %s239 = sadd.s32 %s238, 1
      %p242 = scmp.eq.s32.totalorder %s31, 2
      %p243 = scmp.ne.s32.totalorder %s238, %s240
      %p244 = scmp.eq.s32.totalorder %s31, 0
      %p245 = por %p243, %p244
      %p246 = scmp.ne.s32.totalorder %s238, %s240
      %p247 = scmp.eq.s32.totalorder %s36, 2
      %p248 = por %p246, %p247
      %p249 = scmp.ne.s32.totalorder %s240, %s241
      %p250 = scmp.eq.s32.totalorder %s36, 0
      %p251 = por %p249, %p250
      %p252 = scmp.ne.s32.totalorder %s240, %s241
      %p253 = scmp.eq.s32.totalorder %s37, 2
      %p254 = por %p252, %p253
      %p256 = scmp.ne.s32.totalorder %s241, %s255
      %p257 = scmp.eq.s32.totalorder %s37, 0
      %p258 = por %p256, %p257
      %s260 = sadd.s32 %s259, 1
      %p263 = scmp.eq.s32.totalorder %s31, 2
      %p264 = scmp.ne.s32.totalorder %s259, %s261
      %p265 = scmp.eq.s32.totalorder %s31, 0
      %p266 = por %p264, %p265
      %p267 = scmp.ne.s32.totalorder %s259, %s261
      %p268 = scmp.eq.s32.totalorder %s36, 2
      %p269 = por %p267, %p268
      %p270 = scmp.ne.s32.totalorder %s261, %s262
      %p271 = scmp.eq.s32.totalorder %s36, 0
      %p272 = por %p270, %p271
      %p273 = scmp.ne.s32.totalorder %s261, %s262
      %p274 = scmp.eq.s32.totalorder %s37, 2
      %p275 = por %p273, %p274
      %p277 = scmp.ne.s32.totalorder %s262, %s276
      %p278 = scmp.eq.s32.totalorder %s37, 0
      %p279 = por %p277, %p278
      %s281 = sadd.s32 %s280, 1
      %p284 = scmp.eq.s32.totalorder %s31, 2
      %p285 = scmp.ne.s32.totalorder %s280, %s282
      %p286 = scmp.eq.s32.totalorder %s31, 0
      %p287 = por %p285, %p286
      %p288 = scmp.ne.s32.totalorder %s280, %s282
      %p289 = scmp.eq.s32.totalorder %s36, 2
      %p290 = por %p288, %p289
      %p291 = scmp.ne.s32.totalorder %s282, %s283
      %p292 = scmp.eq.s32.totalorder %s36, 0
      %p293 = por %p291, %p292
      %p294 = scmp.ne.s32.totalorder %s282, %s283
      %p295 = scmp.eq.s32.totalorder %s37, 2
      %p296 = por %p294, %p295
      %p298 = scmp.ne.s32.totalorder %s283, %s297
      %p299 = scmp.eq.s32.totalorder %s37, 0
      %p300 = por %p298, %p299
      %s302 = sadd.s32 %s301, 1
      %p305 = scmp.eq.s32.totalorder %s31, 2
      %p306 = scmp.ne.s32.totalorder %s301, %s303
      %p307 = scmp.eq.s32.totalorder %s31, 0
      %p308 = por %p306, %p307
      %p309 = scmp.ne.s32.totalorder %s301, %s303
      %p310 = scmp.eq.s32.totalorder %s36, 2
      %p311 = por %p309, %p310
      %p312 = scmp.ne.s32.totalorder %s303, %s304
      %p313 = scmp.eq.s32.totalorder %s36, 0
      %p314 = por %p312, %p313
      %p315 = scmp.ne.s32.totalorder %s303, %s304
      %p316 = scmp.eq.s32.totalorder %s37, 2
      %p317 = por %p315, %p316
      %p319 = scmp.ne.s32.totalorder %s304, %s318
      %p320 = scmp.eq.s32.totalorder %s37, 0
      %p321 = por %p319, %p320
      %s323 = sadd.s32 %s322, 1
      %p326 = scmp.eq.s32.totalorder %s31, 2
      %p327 = scmp.ne.s32.totalorder %s322, %s324
      %p328 = scmp.eq.s32.totalorder %s31, 0
      %p329 = por %p327, %p328
      %p330 = scmp.ne.s32.totalorder %s322, %s324
      %p331 = scmp.eq.s32.totalorder %s36, 2
      %p332 = por %p330, %p331
      %p333 = scmp.ne.s32.totalorder %s324, %s325
      %p334 = scmp.eq.s32.totalorder %s36, 0
      %p335 = por %p333, %p334
      %p336 = scmp.ne.s32.totalorder %s324, %s325
      %p337 = scmp.eq.s32.totalorder %s37, 2
      %p338 = por %p336, %p337
      %p340 = scmp.ne.s32.totalorder %s325, %s339
      %p341 = scmp.eq.s32.totalorder %s37, 0
      %p342 = por %p340, %p341
      %s344 = sadd.s32 %s343, 1
      %p347 = scmp.eq.s32.totalorder %s31, 2
      %p348 = scmp.ne.s32.totalorder %s343, %s345
      %p349 = scmp.eq.s32.totalorder %s31, 0
      %p350 = por %p348, %p349
      %p351 = scmp.ne.s32.totalorder %s343, %s345
      %p352 = scmp.eq.s32.totalorder %s36, 2
      %p353 = por %p351, %p352
      %p354 = scmp.ne.s32.totalorder %s345, %s346
      %p355 = scmp.eq.s32.totalorder %s36, 0
      %p356 = por %p354, %p355
      %p357 = scmp.ne.s32.totalorder %s345, %s346
      %p358 = scmp.eq.s32.totalorder %s37, 2
      %p359 = por %p357, %p358
      %p361 = scmp.ne.s32.totalorder %s346, %s360
      %p362 = scmp.eq.s32.totalorder %s37, 0
      %p363 = por %p361, %p362
      %s365 = sadd.s32 %s364, 1
      %p368 = scmp.eq.s32.totalorder %s31, 2
      %p369 = scmp.ne.s32.totalorder %s364, %s366
      %p370 = scmp.eq.s32.totalorder %s31, 0
      %p371 = por %p369, %p370
      %p372 = scmp.ne.s32.totalorder %s364, %s366
      %p373 = scmp.eq.s32.totalorder %s36, 2
      %p374 = por %p372, %p373
      %p375 = scmp.ne.s32.totalorder %s366, %s367
      %p376 = scmp.eq.s32.totalorder %s36, 0
      %p377 = por %p375, %p376
      %p378 = scmp.ne.s32.totalorder %s366, %s367
      %p379 = scmp.eq.s32.totalorder %s37, 2
      %p380 = por %p378, %p379
      %p382 = scmp.ne.s32.totalorder %s367, %s381
      %p383 = scmp.eq.s32.totalorder %s37, 0
      %p384 = por %p382, %p383
      %s386 = sadd.s32 %s385, 1
      %p389 = scmp.eq.s32.totalorder %s31, 2
      %p390 = scmp.ne.s32.totalorder %s385, %s387
      %p391 = scmp.eq.s32.totalorder %s31, 0
      %p392 = por %p390, %p391
      %p393 = scmp.ne.s32.totalorder %s385, %s387
      %p394 = scmp.eq.s32.totalorder %s36, 2
      %p395 = por %p393, %p394
      %p396 = scmp.ne.s32.totalorder %s387, %s388
      %p397 = scmp.eq.s32.totalorder %s36, 0
      %p398 = por %p396, %p397
      %p399 = scmp.ne.s32.totalorder %s387, %s388
      %p400 = scmp.eq.s32.totalorder %s37, 2
      %p401 = por %p399, %p400
      %p403 = scmp.ne.s32.totalorder %s388, %s402
      %p404 = scmp.eq.s32.totalorder %s37, 0
      %p405 = por %p403, %p404
      %s407 = sadd.s32 %s406, 1
      %p410 = scmp.eq.s32.totalorder %s31, 2
      %p411 = scmp.ne.s32.totalorder %s406, %s408
      %p412 = scmp.eq.s32.totalorder %s31, 0
      %p413 = por %p411, %p412
      %p414 = scmp.ne.s32.totalorder %s406, %s408
      %p415 = scmp.eq.s32.totalorder %s36, 2
      %p416 = por %p414, %p415
      %p417 = scmp.ne.s32.totalorder %s408, %s409
      %p418 = scmp.eq.s32.totalorder %s36, 0
      %p419 = por %p417, %p418
      %p420 = scmp.ne.s32.totalorder %s408, %s409
      %p421 = scmp.eq.s32.totalorder %s37, 2
      %p422 = por %p420, %p421
      %p424 = scmp.ne.s32.totalorder %s409, %s423
      %p425 = scmp.eq.s32.totalorder %s37, 0
      %p426 = por %p424, %p425
      %s428 = sadd.s32 %s427, 1
      %p431 = scmp.eq.s32.totalorder %s31, 2
      %p432 = scmp.ne.s32.totalorder %s427, %s429
      %p433 = scmp.eq.s32.totalorder %s31, 0
      %p434 = por %p432, %p433
      %p435 = scmp.ne.s32.totalorder %s427, %s429
      %p436 = scmp.eq.s32.totalorder %s36, 2
      %p437 = por %p435, %p436
      %p438 = scmp.ne.s32.totalorder %s429, %s430
      %p439 = scmp.eq.s32.totalorder %s36, 0
      %p440 = por %p438, %p439
      %p441 = scmp.ne.s32.totalorder %s429, %s430
      %p442 = scmp.eq.s32.totalorder %s37, 2
      %p443 = por %p441, %p442
      %p445 = scmp.ne.s32.totalorder %s430, %s444
      %p446 = scmp.eq.s32.totalorder %s37, 0
      %p447 = por %p445, %p446
      %s449 = sadd.s32 %s448, 1
      %p452 = scmp.eq.s32.totalorder %s31, 2
      %p453 = scmp.ne.s32.totalorder %s448, %s450
      %p454 = scmp.eq.s32.totalorder %s31, 0
      %p455 = por %p453, %p454
      %p456 = scmp.ne.s32.totalorder %s448, %s450
      %p457 = scmp.eq.s32.totalorder %s36, 2
      %p458 = por %p456, %p457
      %p459 = scmp.ne.s32.totalorder %s450, %s451
      %p460 = scmp.eq.s32.totalorder %s36, 0
      %p461 = por %p459, %p460
      %p462 = scmp.ne.s32.totalorder %s450, %s451
      %p463 = scmp.eq.s32.totalorder %s37, 2
      %p464 = por %p462, %p463
      %p466 = scmp.ne.s32.totalorder %s451, %s465
      %p467 = scmp.eq.s32.totalorder %s37, 0
      %p468 = por %p466, %p467
      %s470 = sadd.s32 %s469, 1
      %p473 = scmp.eq.s32.totalorder %s31, 2
      %p474 = scmp.ne.s32.totalorder %s469, %s471
      %p475 = scmp.eq.s32.totalorder %s31, 0
      %p476 = por %p474, %p475
      %p477 = scmp.ne.s32.totalorder %s469, %s471
      %p478 = scmp.eq.s32.totalorder %s36, 2
      %p479 = por %p477, %p478
      %p480 = scmp.ne.s32.totalorder %s471, %s472
      %p481 = scmp.eq.s32.totalorder %s36, 0
      %p482 = por %p480, %p481
      %p483 = scmp.ne.s32.totalorder %s471, %s472
      %p484 = scmp.eq.s32.totalorder %s37, 2
      %p485 = por %p483, %p484
      %p487 = scmp.ne.s32.totalorder %s472, %s486
      %p488 = scmp.eq.s32.totalorder %s37, 0
      %p489 = por %p487, %p488
      %s491 = sadd.s32 %s490, 1
      %p494 = scmp.eq.s32.totalorder %s31, 2
      %p495 = scmp.ne.s32.totalorder %s490, %s492
      %p496 = scmp.eq.s32.totalorder %s31, 0
      %p497 = por %p495, %p496
      %p498 = scmp.ne.s32.totalorder %s490, %s492
      %p499 = scmp.eq.s32.totalorder %s36, 2
      %p500 = por %p498, %p499
      %p501 = scmp.ne.s32.totalorder %s492, %s493
      %p502 = scmp.eq.s32.totalorder %s36, 0
      %p503 = por %p501, %p502
      %p504 = scmp.ne.s32.totalorder %s492, %s493
      %p505 = scmp.eq.s32.totalorder %s37, 2
      %p506 = por %p504, %p505
      %p508 = scmp.ne.s32.totalorder %s493, %s507
      %p509 = scmp.eq.s32.totalorder %s37, 0
      %p510 = por %p508, %p509
      %s511 = ssub.s32 %s31, %s38
      %p512 = scmp.eq.s32.totalorder %s511, 0
      %s514 = sadd.s32 %s513, 1
      %s515 = scalar_select %p512, %s513, %s514
      %p518 = pneg %p512
      %p519 = scmp.eq.s32.totalorder %s31, 2
      %p520 = por %p518, %p519
      %p521 = scmp.ne.s32.totalorder %s513, %s516
      %p522 = scmp.eq.s32.totalorder %s31, 0
      %p523 = por %p521, %p522
      %p524 = scmp.ne.s32.totalorder %s513, %s516
      %p525 = scmp.eq.s32.totalorder %s36, 2
      %p526 = por %p524, %p525
      %p527 = scmp.ne.s32.totalorder %s516, %s517
      %p528 = scmp.eq.s32.totalorder %s36, 0
      %p529 = por %p527, %p528
      %p530 = scmp.ne.s32.totalorder %s516, %s517
      %p531 = scmp.eq.s32.totalorder %s37, 2
      %p532 = por %p530, %p531
      %p534 = scmp.ne.s32.totalorder %s517, %s533
      %p535 = scmp.eq.s32.totalorder %s37, 0
      %p536 = por %p534, %p535
      %p537 = scmp.le.s32.totalorder 1, %s31
      %p538 = scmp.lt.s32.totalorder %s31, 4
      %p539 = pnand %p537, %p538
      %p540 = pneg %p539
      // Predicated region
      $region9: #{tpu_custom_call.1} parent=5 // pred_check
        _
      $region10: #{tpu_custom_call.1} parent=5 // pred_check_branch
        %542 = sbr.rel (%p539) target = $region12
      $region11: #{tpu_custom_call.1} parent=5 // pred_region
        %s543 = ssub.s32 %s31, 1
        // Predicated region
        $region13: #{tpu_custom_call.1} parent=11 // pred_check
          %p544 = pneg %p104
        $region14: #{tpu_custom_call.1} parent=11 // pred_check_branch
          %546 = sbr.rel (%p544) target = $region16
        $region15: #{tpu_custom_call.1} parent=11 // pred_region
          _
        $region16: #{tpu_custom_call.1} parent=11 // pred_fallthru
          _
        // Predicated region
        $region17: #{tpu_custom_call.1} parent=11 // pred_check
          %p547 = pneg %p125
        $region18: #{tpu_custom_call.1} parent=11 // pred_check_branch
          %549 = sbr.rel (%p547) target = $region20
        $region19: #{tpu_custom_call.1} parent=11 // pred_region
          _
        $region20: #{tpu_custom_call.1} parent=11 // pred_fallthru
          _
        // Predicated region
        $region21: #{tpu_custom_call.1} parent=11 // pred_check
          %p550 = pneg %p146
        $region22: #{tpu_custom_call.1} parent=11 // pred_check_branch
          %552 = sbr.rel (%p550) target = $region24
        $region23: #{tpu_custom_call.1} parent=11 // pred_region
          _
        $region24: #{tpu_custom_call.1} parent=11 // pred_fallthru
          _
        // Predicated region
        $region25: #{tpu_custom_call.1} parent=11 // pred_check
          %p553 = pneg %p167
        $region26: #{tpu_custom_call.1} parent=11 // pred_check_branch
          %555 = sbr.rel (%p553) target = $region28
        $region27: #{tpu_custom_call.1} parent=11 // pred_region
          _
        $region28: #{tpu_custom_call.1} parent=11 // pred_fallthru
          _
        // Predicated region
        $region29: #{tpu_custom_call.1} parent=11 // pred_check
          %p556 = pneg %p188
        $region30: #{tpu_custom_call.1} parent=11 // pred_check_branch
          %558 = sbr.rel (%p556) target = $region32
        $region31: #{tpu_custom_call.1} parent=11 // pred_region
          _
        $region32: #{tpu_custom_call.1} parent=11 // pred_fallthru
          _
        // Predicated region
        $region33: #{tpu_custom_call.1} parent=11 // pred_check
          %p559 = pneg %p209
        $region34: #{tpu_custom_call.1} parent=11 // pred_check_branch
          %561 = sbr.rel (%p559) target = $region36
        $region35: #{tpu_custom_call.1} parent=11 // pred_region
          _
        $region36: #{tpu_custom_call.1} parent=11 // pred_fallthru
          _
        // Predicated region
        $region37: #{tpu_custom_call.1} parent=11 // pred_check
          %p562 = pneg %p230
        $region38: #{tpu_custom_call.1} parent=11 // pred_check_branch
          %564 = sbr.rel (%p562) target = $region40
        $region39: #{tpu_custom_call.1} parent=11 // pred_region
          _
        $region40: #{tpu_custom_call.1} parent=11 // pred_fallthru
          _
        // Predicated region
        $region41: #{tpu_custom_call.1} parent=11 // pred_check
          %p565 = pneg %p251
        $region42: #{tpu_custom_call.1} parent=11 // pred_check_branch
          %567 = sbr.rel (%p565) target = $region44
        $region43: #{tpu_custom_call.1} parent=11 // pred_region
          _
        $region44: #{tpu_custom_call.1} parent=11 // pred_fallthru
          _
        // Predicated region
        $region45: #{tpu_custom_call.1} parent=11 // pred_check
          %p568 = pneg %p272
        $region46: #{tpu_custom_call.1} parent=11 // pred_check_branch
          %570 = sbr.rel (%p568) target = $region48
        $region47: #{tpu_custom_call.1} parent=11 // pred_region
          _
        $region48: #{tpu_custom_call.1} parent=11 // pred_fallthru
          _
        // Predicated region
        $region49: #{tpu_custom_call.1} parent=11 // pred_check
          %p571 = pneg %p293
        $region50: #{tpu_custom_call.1} parent=11 // pred_check_branch
          %573 = sbr.rel (%p571) target = $region52
        $region51: #{tpu_custom_call.1} parent=11 // pred_region
          _
        $region52: #{tpu_custom_call.1} parent=11 // pred_fallthru
          _
        // Predicated region
        $region53: #{tpu_custom_call.1} parent=11 // pred_check
          %p574 = pneg %p314
        $region54: #{tpu_custom_call.1} parent=11 // pred_check_branch
          %576 = sbr.rel (%p574) target = $region56
        $region55: #{tpu_custom_call.1} parent=11 // pred_region
          _
        $region56: #{tpu_custom_call.1} parent=11 // pred_fallthru
          _
        // Predicated region
        $region57: #{tpu_custom_call.1} parent=11 // pred_check
          %p577 = pneg %p335
        $region58: #{tpu_custom_call.1} parent=11 // pred_check_branch
          %579 = sbr.rel (%p577) target = $region60
        $region59: #{tpu_custom_call.1} parent=11 // pred_region
          _
        $region60: #{tpu_custom_call.1} parent=11 // pred_fallthru
          _
        // Predicated region
        $region61: #{tpu_custom_call.1} parent=11 // pred_check
          %p580 = pneg %p356
        $region62: #{tpu_custom_call.1} parent=11 // pred_check_branch
          %582 = sbr.rel (%p580) target = $region64
        $region63: #{tpu_custom_call.1} parent=11 // pred_region
          _
        $region64: #{tpu_custom_call.1} parent=11 // pred_fallthru
          _
        // Predicated region
        $region65: #{tpu_custom_call.1} parent=11 // pred_check
          %p583 = pneg %p377
        $region66: #{tpu_custom_call.1} parent=11 // pred_check_branch
          %585 = sbr.rel (%p583) target = $region68
        $region67: #{tpu_custom_call.1} parent=11 // pred_region
          _
        $region68: #{tpu_custom_call.1} parent=11 // pred_fallthru
          _
        // Predicated region
        $region69: #{tpu_custom_call.1} parent=11 // pred_check
          %p586 = pneg %p398
        $region70: #{tpu_custom_call.1} parent=11 // pred_check_branch
          %588 = sbr.rel (%p586) target = $region72
        $region71: #{tpu_custom_call.1} parent=11 // pred_region
          _
        $region72: #{tpu_custom_call.1} parent=11 // pred_fallthru
          _
        // Predicated region
        $region73: #{tpu_custom_call.1} parent=11 // pred_check
          %p589 = pneg %p419
        $region74: #{tpu_custom_call.1} parent=11 // pred_check_branch
          %591 = sbr.rel (%p589) target = $region76
        $region75: #{tpu_custom_call.1} parent=11 // pred_region
          _
        $region76: #{tpu_custom_call.1} parent=11 // pred_fallthru
          _
        // Predicated region
        $region77: #{tpu_custom_call.1} parent=11 // pred_check
          %p592 = pneg %p440
        $region78: #{tpu_custom_call.1} parent=11 // pred_check_branch
          %594 = sbr.rel (%p592) target = $region80
        $region79: #{tpu_custom_call.1} parent=11 // pred_region
          _
        $region80: #{tpu_custom_call.1} parent=11 // pred_fallthru
          _
        // Predicated region
        $region81: #{tpu_custom_call.1} parent=11 // pred_check
          %p595 = pneg %p461
        $region82: #{tpu_custom_call.1} parent=11 // pred_check_branch
          %597 = sbr.rel (%p595) target = $region84
        $region83: #{tpu_custom_call.1} parent=11 // pred_region
          _
        $region84: #{tpu_custom_call.1} parent=11 // pred_fallthru
          _
        // Predicated region
        $region85: #{tpu_custom_call.1} parent=11 // pred_check
          %p598 = pneg %p482
        $region86: #{tpu_custom_call.1} parent=11 // pred_check_branch
          %600 = sbr.rel (%p598) target = $region88
        $region87: #{tpu_custom_call.1} parent=11 // pred_region
          _
        $region88: #{tpu_custom_call.1} parent=11 // pred_fallthru
          _
        // Predicated region
        $region89: #{tpu_custom_call.1} parent=11 // pred_check
          %p601 = pneg %p503
        $region90: #{tpu_custom_call.1} parent=11 // pred_check_branch
          %603 = sbr.rel (%p601) target = $region92
        $region91: #{tpu_custom_call.1} parent=11 // pred_region
          _
        $region92: #{tpu_custom_call.1} parent=11 // pred_fallthru
          _
      $region12: #{tpu_custom_call.1} parent=5 // pred_fallthru
        _
      %p604 = scmp.lt.s32.totalorder %s31, 3
      // Predicated region
      $region93: #{tpu_custom_call.1} parent=5 // pred_check
        %p605 = pneg %p604
      $region94: #{tpu_custom_call.1} parent=5 // pred_check_branch
        %607 = sbr.rel (%p605) target = $region96
      $region95: #{tpu_custom_call.1} parent=5 // pred_region
        // Predicated region
        $region97: #{tpu_custom_call.1} parent=95 // pred_check
          %p608 = pneg %p51
        $region98: #{tpu_custom_call.1} parent=95 // pred_check_branch
          %610 = sbr.rel (%p608) target = $region100
        $region99: #{tpu_custom_call.1} parent=95 // pred_region
          %p611 = scmp.lt.s32.totalorder %s31, 2
          %s612 = scalar_select %p611, %s31, 2
          %s613 = smul.addr %s612, 2
          %s614 = scalar_lea.vmem %s0, %s613
        $region100: #{tpu_custom_call.1} parent=95 // pred_fallthru
          _
        // Predicated region
        $region101: #{tpu_custom_call.1} parent=95 // pred_check
          %p615 = pneg %p77
        $region102: #{tpu_custom_call.1} parent=95 // pred_check_branch
          %617 = sbr.rel (%p615) target = $region104
        $region103: #{tpu_custom_call.1} parent=95 // pred_region
          %p618 = scmp.lt.s32.totalorder %s31, 2
          %s619 = scalar_select %p618, %s31, 2
          %s620 = smul.addr %s619, 4
          %s621 = scalar_lea.vmem %s1, %s620
        $region104: #{tpu_custom_call.1} parent=95 // pred_fallthru
          _
      $region96: #{tpu_custom_call.1} parent=5 // pred_fallthru
        _
      %p622 = scmp.le.s32.totalorder 1, %s31
      %p623 = scmp.lt.s32.totalorder %s31, 4
      %p624 = pnand %p622, %p623
      %p625 = pneg %p624
      // Predicated region
      $region105: #{tpu_custom_call.1} parent=5 // pred_check
        _
      $region106: #{tpu_custom_call.1} parent=5 // pred_check_branch
        %627 = sbr.rel (%p624) target = $region108
      $region107: #{tpu_custom_call.1} parent=5 // pred_region
        %s628 = ssub.s32 %s31, 1
        %p629 = scmp.lt.s32.totalorder %s36, 2
        %s630 = scalar_select %p629, %s36, 2
        %s631 = smul.addr %s630, 2
        %s632 = scalar_lea.vmem %s0, %s631
        %p633 = pneg %p57
        %p634 = pneg %p54
        %p635 = scmp.lt.s32.totalorder %s36, 2
        %s636 = scalar_select %p635, %s36, 2
        %s637 = smul.addr %s636, 4
        %s638 = scalar_lea.vmem %s1, %s637
        %p639 = pneg %p83
        %p640 = pneg %p80
        %p641 = pneg %p104
        %p642 = pneg %p101
        %p643 = pneg %p125
        %p644 = pneg %p122
        %p645 = pneg %p146
        %p646 = pneg %p143
        %p647 = pneg %p167
        %p648 = pneg %p164
        %p649 = pneg %p188
        %p650 = pneg %p185
        %p651 = pneg %p209
        %p652 = pneg %p206
        %p653 = pneg %p230
        %p654 = pneg %p227
        %p655 = pneg %p251
        %p656 = pneg %p248
        %p657 = pneg %p272
        %p658 = pneg %p269
        %p659 = pneg %p293
        %p660 = pneg %p290
        %p661 = pneg %p314
        %p662 = pneg %p311
        %p663 = pneg %p335
        %p664 = pneg %p332
        %p665 = pneg %p356
        %p666 = pneg %p353
        %p667 = pneg %p377
        %p668 = pneg %p374
        %p669 = pneg %p398
        %p670 = pneg %p395
        %p671 = pneg %p419
        %p672 = pneg %p416
        %p673 = pneg %p440
        %p674 = pneg %p437
        %p675 = pneg %p461
        %p676 = pneg %p458
        %p677 = pneg %p482
        %p678 = pneg %p479
        %p679 = pneg %p503
        %p680 = pneg %p500
        %p681 = pneg %p529
        %p682 = pneg %p526
        %s683 = sand.u32 %s516, 1
        %s684 = scalar_lea.sflag [#allocation3], %s683
        %s685 = sand.u32 %s516, 1
        %s686 = smul.addr %s685, 384
        %s687 = scalar_lea.vmem [#allocation2], %s686
        %p688 = scmp.lt.s32.totalorder %s36, 2
        %s689 = scalar_select %p688, %s36, 2
        %s690 = smul.addr %s689, 2
        %s691 = scalar_lea.vmem %s0, %s690
        %p692 = scmp.lt.s32.totalorder %s36, 2
        %s693 = scalar_select %p692, %s36, 2
        %s694 = smul.addr %s693, 4
        %s695 = scalar_lea.vmem %s1, %s694
        %v697 = vld [vmem:[%s691] sm:$0x3]
        %v698 = vld [vmem:[%s695] sm:$0xf]
        %v699 = vld [vmem:[%s2] sm:$0xf]
        %v700 = vld [vmem:[%s2 + $0x4] sm:$0xf]
        %v701 = vld [vmem:[%s2 + $0x8] sm:$0xf]
        %v702 = vld [vmem:[%s2 + $0xc] sm:$0xf]
        %v703 = vld [vmem:[%s3] sm:$0xff]
        %v704 = vld [vmem:[%s3 + $0x8] sm:$0xff]
        %v705 = vld [vmem:[%s3 + $0x10] sm:$0xff]
        %v706 = vld [vmem:[%s3 + $0x18] sm:$0xff]
        %708 = vset.pattern.permute.xlu0 0
        %709 = vperm.xlu0 %708, %v703
        %v710 = vpop.permute.xlu0 %709
        %713 = vset.pattern.permute.xlu0 0
        %714 = vperm.xlu0 %713, %v704
        %v715 = vpop.permute.xlu0 %714
        %718 = vset.pattern.permute.xlu0 0
        %719 = vperm.xlu0 %718, %v705
        %v720 = vpop.permute.xlu0 %719
        %723 = vset.pattern.permute.xlu0 0
        %724 = vperm.xlu0 %723, %v706
        %v725 = vpop.permute.xlu0 %724
        %v731 = vunpack.c.l.b16 %v699
        %v732 = vunpack.c.l.b16 %v700
        %v733 = vunpack.c.l.b16 %v701
        %v734 = vunpack.c.l.b16 %v702
        %v735 = vpack.c.b16 %v732, %v731
        %v736 = vpack.c.b16 %v734, %v733
        %vm737 = vcmask 31744
        %v739 = vsel %vm737, %v735, 0
        %v742 = vsel %vm737, %v736, 0
        %vm744 = vcmask 1041408
        %v746 = vsel %vm744, %v697, 0
        %748 = vmatpush.bf16.msra.mxu0 0
        %749 = vmatpush.bf16.msra.mxu0 0
        %750 = vmatpush.bf16.msra.mxu0 0
        %751 = vmatpush.bf16.msra.mxu0 0
        %752 = vmatpush.bf16.msra.mxu0 0
        %753 = vmatpush.bf16.msra.mxu0 0
        %754 = vmatpush.bf16.msra.mxu0 0
        %755 = vmatpush.bf16.msra.mxu0 %v746
        %756 = vmatmul.bf16.gmra.mxu0 %v739
        %v757 = vpop.f32.mrf.mxu0
        %v758 = vadd.f32 %v710, %v757
        %v759 = vpop.f32.mrf.mxu0
        %v760 = vadd.f32 %v715, %v759
        %761 = vmatmul.bf16.gmra.mxu0 %v742
        %v762 = vpop.f32.mrf.mxu0
        %v763 = vadd.f32 %v720, %v762
        %v764 = vpop.f32.mrf.mxu0
        %v765 = vadd.f32 %v725, %v764
        %766 = vdwg.mxu0
        %v767 = vld [vmem:[%s4] sm:$0xf]
        %v768 = vld [vmem:[%s4 + $0x4] sm:$0xf]
        %v769 = vld [vmem:[%s4 + $0x8] sm:$0xf]
        %v770 = vld [vmem:[%s4 + $0xc] sm:$0xf]
        %v771 = vld [vmem:[%s5] sm:$0xff]
        %v772 = vld [vmem:[%s5 + $0x8] sm:$0xff]
        %v773 = vld [vmem:[%s5 + $0x10] sm:$0xff]
        %v774 = vld [vmem:[%s5 + $0x18] sm:$0xff]
        %776 = vset.pattern.permute.xlu0 0
        %777 = vperm.xlu0 %776, %v771
        %v778 = vpop.permute.xlu0 %777
        %781 = vset.pattern.permute.xlu0 0
        %782 = vperm.xlu0 %781, %v772
        %v783 = vpop.permute.xlu0 %782
        %786 = vset.pattern.permute.xlu0 0
        %787 = vperm.xlu0 %786, %v773
        %v788 = vpop.permute.xlu0 %787
        %791 = vset.pattern.permute.xlu0 0
        %792 = vperm.xlu0 %791, %v774
        %v793 = vpop.permute.xlu0 %792
        %v799 = vunpack.c.l.b16 %v767
        %v800 = vunpack.c.l.b16 %v768
        %v801 = vunpack.c.l.b16 %v769
        %v802 = vunpack.c.l.b16 %v770
        %v803 = vpack.c.b16 %v800, %v799
        %v804 = vpack.c.b16 %v802, %v801
        %vm805 = vcmask 64512
        %v807 = vsel %vm805, %v803, 0
        %v810 = vsel %vm805, %v804, 0
        %vm812 = vcmask 1043456
        %v814 = vsel %vm812, %v698, 0
        %816 = vmatpush.bf16.msra.mxu0 0
        %817 = vmatpush.bf16.msra.mxu0 0
        %818 = vmatpush.bf16.msra.mxu0 0
        %819 = vmatpush.bf16.msra.mxu0 0
        %820 = vmatpush.bf16.msra.mxu0 0
        %821 = vmatpush.bf16.msra.mxu0 0
        %822 = vmatpush.bf16.msra.mxu0 0
        %823 = vmatpush.bf16.msra.mxu0 %v814
        %824 = vmatmul.bf16.gmra.mxu0 %v807
        %v825 = vpop.f32.mrf.mxu0
        %v826 = vadd.f32 %v778, %v825
        %v827 = vpop.f32.mrf.mxu0
        %v828 = vadd.f32 %v783, %v827
        %829 = vmatmul.bf16.gmra.mxu0 %v810
        %v830 = vpop.f32.mrf.mxu0
        %v831 = vadd.f32 %v788, %v830
        %v832 = vpop.f32.mrf.mxu0
        %v833 = vadd.f32 %v793, %v832
        %834 = vdwg.mxu0
        %v835 = vmax.f32 %v826, 0.0
        %v836 = vmax.f32 %v828, 0.0
        %v837 = vmax.f32 %v831, 0.0
        %v838 = vmax.f32 %v833, 0.0
        %v839 = vld [vmem:[%s6] sm:$0xf]
        %v840 = vld [vmem:[%s6 + $0x4] sm:$0xf]
        %v841 = vld [vmem:[%s6 + $0x8] sm:$0xf]
        %v842 = vld [vmem:[%s6 + $0xc] sm:$0xf]
        %v843 = vpack.c.bf16 %v836, %v835
        %v844 = vpack.c.bf16 %v838, %v837
        %v849 = vunpack.c.l.b16 %v839
        %v850 = vunpack.c.l.b16 %v840
        %v851 = vunpack.c.l.b16 %v841
        %v852 = vunpack.c.l.b16 %v842
        %v853 = vpack.c.b16 %v850, %v849
        %v854 = vpack.c.b16 %v852, %v851
        %vm855 = vcmask 261120
        %v857 = vsel %vm855, %v853, 0
        %v860 = vsel %vm855, %v854, 0
        %862 = vmatpush.bf16.msra.mxu0 0
        %863 = vmatpush.bf16.msra.mxu0 0
        %864 = vmatpush.bf16.msra.mxu0 0
        %865 = vmatpush.bf16.msra.mxu0 0
        %866 = vmatpush.bf16.msra.mxu0 0
        %867 = vmatpush.bf16.msra.mxu0 0
        %868 = vmatpush.bf16.msra.mxu0 %v844
        %869 = vmatpush.bf16.msra.mxu0 %v843
        %870 = vmatmul.bf16.gmra.mxu0 %v857
        %v871 = vpop.f32.mrf.mxu0
        %v872 = vadd.f32 0.0, %v871
        %v873 = vpop.f32.mrf.mxu0
        %v874 = vadd.f32 0.0, %v873
        %875 = vmatmul.bf16.gmra.mxu0 %v860
        %v876 = vpop.f32.mrf.mxu0
        %v877 = vadd.f32 0.0, %v876
        %v878 = vpop.f32.mrf.mxu0
        %v879 = vadd.f32 0.0, %v878
        %880 = vdwg.mxu0
        %v881 = vadd.f32 %v758, %v872
        %v882 = vadd.f32 %v760, %v874
        %v883 = vadd.f32 %v763, %v877
        %v884 = vadd.f32 %v765, %v879
        %v885 = vld [vmem:[%s7] sm:$0xff]
        %v886 = vld [vmem:[%s7 + $0x8] sm:$0xff]
        %v887 = vld [vmem:[%s7 + $0x10] sm:$0xff]
        %v888 = vld [vmem:[%s7 + $0x18] sm:$0xff]
        %890 = vset.pattern.permute.xlu0 0
        %891 = vperm.xlu0 %890, %v885
        %v892 = vpop.permute.xlu0 %891
        %895 = vset.pattern.permute.xlu0 0
        %896 = vperm.xlu0 %895, %v886
        %v897 = vpop.permute.xlu0 %896
        %900 = vset.pattern.permute.xlu0 0
        %901 = vperm.xlu0 %900, %v887
        %v902 = vpop.permute.xlu0 %901
        %905 = vset.pattern.permute.xlu0 0
        %906 = vperm.xlu0 %905, %v888
        %v907 = vpop.permute.xlu0 %906
        %v909 = vadd.f32 %v881, %v892
        %v910 = vadd.f32 %v882, %v897
        %v911 = vadd.f32 %v883, %v902
        %v912 = vadd.f32 %v884, %v907
        %v913 = vmax.f32 %v909, 0.0
        %v914 = vmax.f32 %v910, 0.0
        %v915 = vmax.f32 %v911, 0.0
        %v916 = vmax.f32 %v912, 0.0
        %v917 = vld [vmem:[%s8] sm:$0xf]
        %v918 = vld [vmem:[%s8 + $0x4] sm:$0xf]
        %v919 = vld [vmem:[%s8 + $0x8] sm:$0xf]
        %v920 = vld [vmem:[%s8 + $0xc] sm:$0xf]
        %v921 = vpack.c.bf16 %v914, %v913
        %v922 = vpack.c.bf16 %v916, %v915
        %v923 = vld [vmem:[%s9] sm:$0xff]
        %v924 = vld [vmem:[%s9 + $0x8] sm:$0xff]
        %v925 = vld [vmem:[%s9 + $0x10] sm:$0xff]
        %v926 = vld [vmem:[%s9 + $0x18] sm:$0xff]
        %928 = vset.pattern.permute.xlu0 0
        %929 = vperm.xlu0 %928, %v923
        %v930 = vpop.permute.xlu0 %929
        %933 = vset.pattern.permute.xlu0 0
        %934 = vperm.xlu0 %933, %v924
        %v935 = vpop.permute.xlu0 %934
        %938 = vset.pattern.permute.xlu0 0
        %939 = vperm.xlu0 %938, %v925
        %v940 = vpop.permute.xlu0 %939
        %943 = vset.pattern.permute.xlu0 0
        %944 = vperm.xlu0 %943, %v926
        %v945 = vpop.permute.xlu0 %944
        %v951 = vunpack.c.l.b16 %v917
        %v952 = vunpack.c.l.b16 %v918
        %v953 = vunpack.c.l.b16 %v919
        %v954 = vunpack.c.l.b16 %v920
        %v955 = vpack.c.b16 %v952, %v951
        %v956 = vpack.c.b16 %v954, %v953
        %v958 = vsel %vm855, %v955, 0
        %v961 = vsel %vm855, %v956, 0
        %963 = vmatpush.bf16.msra.mxu0 0
        %964 = vmatpush.bf16.msra.mxu0 0
        %965 = vmatpush.bf16.msra.mxu0 0
        %966 = vmatpush.bf16.msra.mxu0 0
        %967 = vmatpush.bf16.msra.mxu0 0
        %968 = vmatpush.bf16.msra.mxu0 0
        %969 = vmatpush.bf16.msra.mxu0 %v922
        %970 = vmatpush.bf16.msra.mxu0 %v921
        %971 = vmatmul.bf16.gmra.mxu0 %v958
        %v972 = vpop.f32.mrf.mxu0
        %v973 = vadd.f32 %v930, %v972
        %v974 = vpop.f32.mrf.mxu0
        %v975 = vadd.f32 %v935, %v974
        %976 = vmatmul.bf16.gmra.mxu0 %v961
        %v977 = vpop.f32.mrf.mxu0
        %v978 = vadd.f32 %v940, %v977
        %v979 = vpop.f32.mrf.mxu0
        %v980 = vadd.f32 %v945, %v979
        %981 = vdwg.mxu0
        %v982 = vmax.f32 %v973, 0.0
        %v983 = vmax.f32 %v975, 0.0
        %v984 = vmax.f32 %v978, 0.0
        %v985 = vmax.f32 %v980, 0.0
        %v986 = vld [vmem:[%s10] sm:$0xf]
        %v987 = vld [vmem:[%s10 + $0x4] sm:$0xf]
        %v988 = vld [vmem:[%s10 + $0x8] sm:$0xf]
        %v989 = vld [vmem:[%s10 + $0xc] sm:$0xf]
        %v990 = vpack.c.bf16 %v983, %v982
        %v991 = vpack.c.bf16 %v985, %v984
        %v992 = vld [vmem:[%s11] sm:$0xff]
        %v993 = vld [vmem:[%s11 + $0x8] sm:$0xff]
        %v994 = vld [vmem:[%s11 + $0x10] sm:$0xff]
        %v995 = vld [vmem:[%s11 + $0x18] sm:$0xff]
        %997 = vset.pattern.permute.xlu0 0
        %998 = vperm.xlu0 %997, %v992
        %v999 = vpop.permute.xlu0 %998
        %1002 = vset.pattern.permute.xlu0 0
        %1003 = vperm.xlu0 %1002, %v993
        %v1004 = vpop.permute.xlu0 %1003
        %1007 = vset.pattern.permute.xlu0 0
        %1008 = vperm.xlu0 %1007, %v994
        %v1009 = vpop.permute.xlu0 %1008
        %1012 = vset.pattern.permute.xlu0 0
        %1013 = vperm.xlu0 %1012, %v995
        %v1014 = vpop.permute.xlu0 %1013
        %v1020 = vunpack.c.l.b16 %v986
        %v1021 = vunpack.c.l.b16 %v987
        %v1022 = vunpack.c.l.b16 %v988
        %v1023 = vunpack.c.l.b16 %v989
        %v1024 = vpack.c.b16 %v1021, %v1020
        %v1025 = vpack.c.b16 %v1023, %v1022
        %v1027 = vsel %vm855, %v1024, 0
        %v1030 = vsel %vm855, %v1025, 0
        %1032 = vmatpush.bf16.msra.mxu0 0
        %1033 = vmatpush.bf16.msra.mxu0 0
        %1034 = vmatpush.bf16.msra.mxu0 0
        %1035 = vmatpush.bf16.msra.mxu0 0
        %1036 = vmatpush.bf16.msra.mxu0 0
        %1037 = vmatpush.bf16.msra.mxu0 0
        %1038 = vmatpush.bf16.msra.mxu0 %v991
        %1039 = vmatpush.bf16.msra.mxu0 %v990
        %1040 = vmatmul.bf16.gmra.mxu0 %v1027
        %v1041 = vpop.f32.mrf.mxu0
        %v1042 = vadd.f32 %v999, %v1041
        %v1043 = vpop.f32.mrf.mxu0
        %v1044 = vadd.f32 %v1004, %v1043
        %1045 = vmatmul.bf16.gmra.mxu0 %v1030
        %v1046 = vpop.f32.mrf.mxu0
        %v1047 = vadd.f32 %v1009, %v1046
        %v1048 = vpop.f32.mrf.mxu0
        %v1049 = vadd.f32 %v1014, %v1048
        %1050 = vdwg.mxu0
        %v1051 = vld [vmem:[%s12] sm:$0xf]
        %v1052 = vld [vmem:[%s12 + $0x4] sm:$0xf]
        %v1053 = vld [vmem:[%s12 + $0x8] sm:$0xf]
        %v1054 = vld [vmem:[%s12 + $0xc] sm:$0xf]
        %v1055 = vld [vmem:[%s13] sm:$0xff]
        %v1056 = vld [vmem:[%s13 + $0x8] sm:$0xff]
        %v1057 = vld [vmem:[%s13 + $0x10] sm:$0xff]
        %v1058 = vld [vmem:[%s13 + $0x18] sm:$0xff]
        %1060 = vset.pattern.permute.xlu0 0
        %1061 = vperm.xlu0 %1060, %v1055
        %v1062 = vpop.permute.xlu0 %1061
        %1065 = vset.pattern.permute.xlu0 0
        %1066 = vperm.xlu0 %1065, %v1056
        %v1067 = vpop.permute.xlu0 %1066
        %1070 = vset.pattern.permute.xlu0 0
        %1071 = vperm.xlu0 %1070, %v1057
        %v1072 = vpop.permute.xlu0 %1071
        %1075 = vset.pattern.permute.xlu0 0
        %1076 = vperm.xlu0 %1075, %v1058
        %v1077 = vpop.permute.xlu0 %1076
        %v1083 = vunpack.c.l.b16 %v1051
        %v1084 = vunpack.c.l.b16 %v1052
        %v1085 = vunpack.c.l.b16 %v1053
        %v1086 = vunpack.c.l.b16 %v1054
        %v1087 = vpack.c.b16 %v1084, %v1083
        %v1088 = vpack.c.b16 %v1086, %v1085
        %v1090 = vsel %vm805, %v1087, 0
        %v1093 = vsel %vm805, %v1088, 0
        %1095 = vmatpush.bf16.msra.mxu0 0
        %1096 = vmatpush.bf16.msra.mxu0 0
        %1097 = vmatpush.bf16.msra.mxu0 0
        %1098 = vmatpush.bf16.msra.mxu0 0
        %1099 = vmatpush.bf16.msra.mxu0 0
        %1100 = vmatpush.bf16.msra.mxu0 0
        %1101 = vmatpush.bf16.msra.mxu0 0
        %1102 = vmatpush.bf16.msra.mxu0 %v814
        %1103 = vmatmul.bf16.gmra.mxu0 %v1090
        %v1104 = vpop.f32.mrf.mxu0
        %v1105 = vadd.f32 %v1062, %v1104
        %v1106 = vpop.f32.mrf.mxu0
        %v1107 = vadd.f32 %v1067, %v1106
        %1108 = vmatmul.bf16.gmra.mxu0 %v1093
        %v1109 = vpop.f32.mrf.mxu0
        %v1110 = vadd.f32 %v1072, %v1109
        %v1111 = vpop.f32.mrf.mxu0
        %v1112 = vadd.f32 %v1077, %v1111
        %1113 = vdwg.mxu0
        %v1114 = vsub.f32 0.0, %v1105
        %v1115 = vsub.f32 0.0, %v1107
        %v1116 = vsub.f32 0.0, %v1110
        %v1117 = vsub.f32 0.0, %v1112
        %v1118 = vmul.f32 %v1114, 1.442695
        %v1119 = vpow.pop %v1118
        %v1120 = vmul.f32 %v1115, 1.442695
        %v1121 = vpow.pop %v1120
        %v1122 = vmul.f32 %v1116, 1.442695
        %v1123 = vpow.pop %v1122
        %v1124 = vmul.f32 %v1117, 1.442695
        %v1125 = vpow.pop %v1124
        %v1126 = vadd.f32 %v1119, 1.0
        %v1127 = vadd.f32 %v1121, 1.0
        %v1128 = vadd.f32 %v1123, 1.0
        %v1129 = vadd.f32 %v1125, 1.0
        %v1130 = vrcp.pop %v1126
        %v1131 = vmul.f32 %v1126, %v1130
        %v1132 = vsub.f32 1.0, %v1131
        %v1133 = vmul.f32 %v1130, %v1132
        %v1134 = vadd.f32 %v1130, %v1133
        %vm1135 = vweird.f32 %v1126
        %vm1136 = vweird.f32 %v1130
        %vm1137 = vmor %vm1135, %vm1136
        %v1138 = vsel %vm1137, %v1130, %v1134
        %v1139 = vand.u32 2147483647, %v1126
        %vm1140 = vcmp.eq.f32.partialorder %v1139, 8.507059e+37
        %v1141 = vand.u32 %v1126, 2147483648
        %v1142 = vor.u32 1.1754944e-38, %v1141
        %v1143 = vsel %vm1140, %v1142, %v1138
        %v1144 = vmul.f32 1.0, %v1143
        %v1145 = vrcp.pop %v1127
        %v1146 = vmul.f32 %v1127, %v1145
        %v1147 = vsub.f32 1.0, %v1146
        %v1148 = vmul.f32 %v1145, %v1147
        %v1149 = vadd.f32 %v1145, %v1148
        %vm1150 = vweird.f32 %v1127
        %vm1151 = vweird.f32 %v1145
        %vm1152 = vmor %vm1150, %vm1151
        %v1153 = vsel %vm1152, %v1145, %v1149
        %v1154 = vand.u32 2147483647, %v1127
        %vm1155 = vcmp.eq.f32.partialorder %v1154, 8.507059e+37
        %v1156 = vand.u32 %v1127, 2147483648
        %v1157 = vor.u32 1.1754944e-38, %v1156
        %v1158 = vsel %vm1155, %v1157, %v1153
        %v1159 = vmul.f32 1.0, %v1158
        %v1160 = vrcp.pop %v1128
        %v1161 = vmul.f32 %v1128, %v1160
        %v1162 = vsub.f32 1.0, %v1161
        %v1163 = vmul.f32 %v1160, %v1162
        %v1164 = vadd.f32 %v1160, %v1163
        %vm1165 = vweird.f32 %v1128
        %vm1166 = vweird.f32 %v1160
        %vm1167 = vmor %vm1165, %vm1166
        %v1168 = vsel %vm1167, %v1160, %v1164
        %v1169 = vand.u32 2147483647, %v1128
        %vm1170 = vcmp.eq.f32.partialorder %v1169, 8.507059e+37
        %v1171 = vand.u32 %v1128, 2147483648
        %v1172 = vor.u32 1.1754944e-38, %v1171
        %v1173 = vsel %vm1170, %v1172, %v1168
        %v1174 = vmul.f32 1.0, %v1173
        %v1175 = vrcp.pop %v1129
        %v1176 = vmul.f32 %v1129, %v1175
        %v1177 = vsub.f32 1.0, %v1176
        %v1178 = vmul.f32 %v1175, %v1177
        %v1179 = vadd.f32 %v1175, %v1178
        %vm1180 = vweird.f32 %v1129
        %vm1181 = vweird.f32 %v1175
        %vm1182 = vmor %vm1180, %vm1181
        %v1183 = vsel %vm1182, %v1175, %v1179
        %v1184 = vand.u32 2147483647, %v1129
        %vm1185 = vcmp.eq.f32.partialorder %v1184, 8.507059e+37
        %v1186 = vand.u32 %v1129, 2147483648
        %v1187 = vor.u32 1.1754944e-38, %v1186
        %v1188 = vsel %vm1185, %v1187, %v1183
        %v1189 = vmul.f32 1.0, %v1188
        %v1190 = vmul.f32 %v1042, %v1144
        %v1191 = vmul.f32 %v1044, %v1159
        %v1192 = vmul.f32 %v1047, %v1174
        %v1193 = vmul.f32 %v1049, %v1189
        %v1194 = vadd.f32 %v909, %v1190
        %v1195 = vadd.f32 %v910, %v1191
        %v1196 = vadd.f32 %v911, %v1192
        %v1197 = vadd.f32 %v912, %v1193
        %v1198 = vmax.f32 %v1194, 0.0
        %v1199 = vmax.f32 %v1195, 0.0
        %v1200 = vmax.f32 %v1196, 0.0
        %v1201 = vmax.f32 %v1197, 0.0
        %v1202 = vld [vmem:[%s14] sm:$0xf]
        %v1203 = vld [vmem:[%s14 + $0x4] sm:$0xf]
        %v1204 = vld [vmem:[%s14 + $0x8] sm:$0xf]
        %v1205 = vld [vmem:[%s14 + $0xc] sm:$0xf]
        %v1206 = vpack.c.bf16 %v1199, %v1198
        %v1207 = vpack.c.bf16 %v1201, %v1200
        %v1208 = vld [vmem:[%s15] sm:$0xff]
        %v1209 = vld [vmem:[%s15 + $0x8] sm:$0xff]
        %v1210 = vld [vmem:[%s15 + $0x10] sm:$0xff]
        %v1211 = vld [vmem:[%s15 + $0x18] sm:$0xff]
        %1213 = vset.pattern.permute.xlu0 0
        %1214 = vperm.xlu0 %1213, %v1208
        %v1215 = vpop.permute.xlu0 %1214
        %1218 = vset.pattern.permute.xlu0 0
        %1219 = vperm.xlu0 %1218, %v1209
        %v1220 = vpop.permute.xlu0 %1219
        %1223 = vset.pattern.permute.xlu0 0
        %1224 = vperm.xlu0 %1223, %v1210
        %v1225 = vpop.permute.xlu0 %1224
        %1228 = vset.pattern.permute.xlu0 0
        %1229 = vperm.xlu0 %1228, %v1211
        %v1230 = vpop.permute.xlu0 %1229
        %v1236 = vunpack.c.l.b16 %v1202
        %v1237 = vunpack.c.l.b16 %v1203
        %v1238 = vunpack.c.l.b16 %v1204
        %v1239 = vunpack.c.l.b16 %v1205
        %v1240 = vpack.c.b16 %v1237, %v1236
        %v1241 = vpack.c.b16 %v1239, %v1238
        %v1243 = vsel %vm855, %v1240, 0
        %v1246 = vsel %vm855, %v1241, 0
        %1248 = vmatpush.bf16.msra.mxu0 0
        %1249 = vmatpush.bf16.msra.mxu0 0
        %1250 = vmatpush.bf16.msra.mxu0 0
        %1251 = vmatpush.bf16.msra.mxu0 0
        %1252 = vmatpush.bf16.msra.mxu0 0
        %1253 = vmatpush.bf16.msra.mxu0 0
        %1254 = vmatpush.bf16.msra.mxu0 %v1207
        %1255 = vmatpush.bf16.msra.mxu0 %v1206
        %1256 = vmatmul.bf16.gmra.mxu0 %v1243
        %v1257 = vpop.f32.mrf.mxu0
        %v1258 = vadd.f32 %v1215, %v1257
        %v1259 = vpop.f32.mrf.mxu0
        %v1260 = vadd.f32 %v1220, %v1259
        %1261 = vmatmul.bf16.gmra.mxu0 %v1246
        %v1262 = vpop.f32.mrf.mxu0
        %v1263 = vadd.f32 %v1225, %v1262
        %v1264 = vpop.f32.mrf.mxu0
        %v1265 = vadd.f32 %v1230, %v1264
        %1266 = vdwg.mxu0
        %v1267 = vmax.f32 %v1258, 0.0
        %v1268 = vmax.f32 %v1260, 0.0
        %v1269 = vmax.f32 %v1263, 0.0
        %v1270 = vmax.f32 %v1265, 0.0
        %v1271 = vld [vmem:[%s16] sm:$0xf]
        %v1272 = vld [vmem:[%s16 + $0x4] sm:$0xf]
        %v1273 = vld [vmem:[%s16 + $0x8] sm:$0xf]
        %v1274 = vld [vmem:[%s16 + $0xc] sm:$0xf]
        %v1275 = vpack.c.bf16 %v1268, %v1267
        %v1276 = vpack.c.bf16 %v1270, %v1269
        %v1277 = vld [vmem:[%s17] sm:$0xff]
        %v1278 = vld [vmem:[%s17 + $0x8] sm:$0xff]
        %v1279 = vld [vmem:[%s17 + $0x10] sm:$0xff]
        %v1280 = vld [vmem:[%s17 + $0x18] sm:$0xff]
        %1282 = vset.pattern.permute.xlu0 0
        %1283 = vperm.xlu0 %1282, %v1277
        %v1284 = vpop.permute.xlu0 %1283
        %1287 = vset.pattern.permute.xlu0 0
        %1288 = vperm.xlu0 %1287, %v1278
        %v1289 = vpop.permute.xlu0 %1288
        %1292 = vset.pattern.permute.xlu0 0
        %1293 = vperm.xlu0 %1292, %v1279
        %v1294 = vpop.permute.xlu0 %1293
        %1297 = vset.pattern.permute.xlu0 0
        %1298 = vperm.xlu0 %1297, %v1280
        %v1299 = vpop.permute.xlu0 %1298
        %v1305 = vunpack.c.l.b16 %v1271
        %v1306 = vunpack.c.l.b16 %v1272
        %v1307 = vunpack.c.l.b16 %v1273
        %v1308 = vunpack.c.l.b16 %v1274
        %v1309 = vpack.c.b16 %v1306, %v1305
        %v1310 = vpack.c.b16 %v1308, %v1307
        %v1312 = vsel %vm855, %v1309, 0
        %v1315 = vsel %vm855, %v1310, 0
        %1317 = vmatpush.bf16.msra.mxu0 0
        %1318 = vmatpush.bf16.msra.mxu0 0
        %1319 = vmatpush.bf16.msra.mxu0 0
        %1320 = vmatpush.bf16.msra.mxu0 0
        %1321 = vmatpush.bf16.msra.mxu0 0
        %1322 = vmatpush.bf16.msra.mxu0 0
        %1323 = vmatpush.bf16.msra.mxu0 %v1276
        %1324 = vmatpush.bf16.msra.mxu0 %v1275
        %1325 = vmatmul.bf16.gmra.mxu0 %v1312
        %v1326 = vpop.f32.mrf.mxu0
        %v1327 = vadd.f32 %v1284, %v1326
        %v1328 = vpop.f32.mrf.mxu0
        %v1329 = vadd.f32 %v1289, %v1328
        %1330 = vmatmul.bf16.gmra.mxu0 %v1315
        %v1331 = vpop.f32.mrf.mxu0
        %v1332 = vadd.f32 %v1294, %v1331
        %v1333 = vpop.f32.mrf.mxu0
        %v1334 = vadd.f32 %v1299, %v1333
        %1335 = vdwg.mxu0
        %v1336 = vld [vmem:[%s18] sm:$0xf]
        %v1337 = vld [vmem:[%s18 + $0x4] sm:$0xf]
        %v1338 = vld [vmem:[%s18 + $0x8] sm:$0xf]
        %v1339 = vld [vmem:[%s18 + $0xc] sm:$0xf]
        %v1340 = vld [vmem:[%s19] sm:$0xff]
        %v1341 = vld [vmem:[%s19 + $0x8] sm:$0xff]
        %v1342 = vld [vmem:[%s19 + $0x10] sm:$0xff]
        %v1343 = vld [vmem:[%s19 + $0x18] sm:$0xff]
        %1345 = vset.pattern.permute.xlu0 0
        %1346 = vperm.xlu0 %1345, %v1340
        %v1347 = vpop.permute.xlu0 %1346
        %1350 = vset.pattern.permute.xlu0 0
        %1351 = vperm.xlu0 %1350, %v1341
        %v1352 = vpop.permute.xlu0 %1351
        %1355 = vset.pattern.permute.xlu0 0
        %1356 = vperm.xlu0 %1355, %v1342
        %v1357 = vpop.permute.xlu0 %1356
        %1360 = vset.pattern.permute.xlu0 0
        %1361 = vperm.xlu0 %1360, %v1343
        %v1362 = vpop.permute.xlu0 %1361
        %v1368 = vunpack.c.l.b16 %v1336
        %v1369 = vunpack.c.l.b16 %v1337
        %v1370 = vunpack.c.l.b16 %v1338
        %v1371 = vunpack.c.l.b16 %v1339
        %v1372 = vpack.c.b16 %v1369, %v1368
        %v1373 = vpack.c.b16 %v1371, %v1370
        %v1375 = vsel %vm805, %v1372, 0
        %v1378 = vsel %vm805, %v1373, 0
        %1380 = vmatpush.bf16.msra.mxu0 0
        %1381 = vmatpush.bf16.msra.mxu0 0
        %1382 = vmatpush.bf16.msra.mxu0 0
        %1383 = vmatpush.bf16.msra.mxu0 0
        %1384 = vmatpush.bf16.msra.mxu0 0
        %1385 = vmatpush.bf16.msra.mxu0 0
        %1386 = vmatpush.bf16.msra.mxu0 0
        %1387 = vmatpush.bf16.msra.mxu0 %v814
        %1388 = vmatmul.bf16.gmra.mxu0 %v1375
        %v1389 = vpop.f32.mrf.mxu0
        %v1390 = vadd.f32 %v1347, %v1389
        %v1391 = vpop.f32.mrf.mxu0
        %v1392 = vadd.f32 %v1352, %v1391
        %1393 = vmatmul.bf16.gmra.mxu0 %v1378
        %v1394 = vpop.f32.mrf.mxu0
        %v1395 = vadd.f32 %v1357, %v1394
        %v1396 = vpop.f32.mrf.mxu0
        %v1397 = vadd.f32 %v1362, %v1396
        %1398 = vdwg.mxu0
        %v1399 = vsub.f32 0.0, %v1390
        %v1400 = vsub.f32 0.0, %v1392
        %v1401 = vsub.f32 0.0, %v1395
        %v1402 = vsub.f32 0.0, %v1397
        %v1403 = vmul.f32 %v1399, 1.442695
        %v1404 = vpow.pop %v1403
        %v1405 = vmul.f32 %v1400, 1.442695
        %v1406 = vpow.pop %v1405
        %v1407 = vmul.f32 %v1401, 1.442695
        %v1408 = vpow.pop %v1407
        %v1409 = vmul.f32 %v1402, 1.442695
        %v1410 = vpow.pop %v1409
        %v1411 = vadd.f32 %v1404, 1.0
        %v1412 = vadd.f32 %v1406, 1.0
        %v1413 = vadd.f32 %v1408, 1.0
        %v1414 = vadd.f32 %v1410, 1.0
        %v1415 = vrcp.pop %v1411
        %v1416 = vmul.f32 %v1411, %v1415
        %v1417 = vsub.f32 1.0, %v1416
        %v1418 = vmul.f32 %v1415, %v1417
        %v1419 = vadd.f32 %v1415, %v1418
        %vm1420 = vweird.f32 %v1411
        %vm1421 = vweird.f32 %v1415
        %vm1422 = vmor %vm1420, %vm1421
        %v1423 = vsel %vm1422, %v1415, %v1419
        %v1424 = vand.u32 2147483647, %v1411
        %vm1425 = vcmp.eq.f32.partialorder %v1424, 8.507059e+37
        %v1426 = vand.u32 %v1411, 2147483648
        %v1427 = vor.u32 1.1754944e-38, %v1426
        %v1428 = vsel %vm1425, %v1427, %v1423
        %v1429 = vmul.f32 1.0, %v1428
        %v1430 = vrcp.pop %v1412
        %v1431 = vmul.f32 %v1412, %v1430
        %v1432 = vsub.f32 1.0, %v1431
        %v1433 = vmul.f32 %v1430, %v1432
        %v1434 = vadd.f32 %v1430, %v1433
        %vm1435 = vweird.f32 %v1412
        %vm1436 = vweird.f32 %v1430
        %vm1437 = vmor %vm1435, %vm1436
        %v1438 = vsel %vm1437, %v1430, %v1434
        %v1439 = vand.u32 2147483647, %v1412
        %vm1440 = vcmp.eq.f32.partialorder %v1439, 8.507059e+37
        %v1441 = vand.u32 %v1412, 2147483648
        %v1442 = vor.u32 1.1754944e-38, %v1441
        %v1443 = vsel %vm1440, %v1442, %v1438
        %v1444 = vmul.f32 1.0, %v1443
        %v1445 = vrcp.pop %v1413
        %v1446 = vmul.f32 %v1413, %v1445
        %v1447 = vsub.f32 1.0, %v1446
        %v1448 = vmul.f32 %v1445, %v1447
        %v1449 = vadd.f32 %v1445, %v1448
        %vm1450 = vweird.f32 %v1413
        %vm1451 = vweird.f32 %v1445
        %vm1452 = vmor %vm1450, %vm1451
        %v1453 = vsel %vm1452, %v1445, %v1449
        %v1454 = vand.u32 2147483647, %v1413
        %vm1455 = vcmp.eq.f32.partialorder %v1454, 8.507059e+37
        %v1456 = vand.u32 %v1413, 2147483648
        %v1457 = vor.u32 1.1754944e-38, %v1456
        %v1458 = vsel %vm1455, %v1457, %v1453
        %v1459 = vmul.f32 1.0, %v1458
        %v1460 = vrcp.pop %v1414
        %v1461 = vmul.f32 %v1414, %v1460
        %v1462 = vsub.f32 1.0, %v1461
        %v1463 = vmul.f32 %v1460, %v1462
        %v1464 = vadd.f32 %v1460, %v1463
        %vm1465 = vweird.f32 %v1414
        %vm1466 = vweird.f32 %v1460
        %vm1467 = vmor %vm1465, %vm1466
        %v1468 = vsel %vm1467, %v1460, %v1464
        %v1469 = vand.u32 2147483647, %v1414
        %vm1470 = vcmp.eq.f32.partialorder %v1469, 8.507059e+37
        %v1471 = vand.u32 %v1414, 2147483648
        %v1472 = vor.u32 1.1754944e-38, %v1471
        %v1473 = vsel %vm1470, %v1472, %v1468
        %v1474 = vmul.f32 1.0, %v1473
        %v1475 = vmul.f32 %v1327, %v1429
        %v1476 = vmul.f32 %v1329, %v1444
        %v1477 = vmul.f32 %v1332, %v1459
        %v1478 = vmul.f32 %v1334, %v1474
        %v1479 = vadd.f32 %v1194, %v1475
        %v1480 = vadd.f32 %v1195, %v1476
        %v1481 = vadd.f32 %v1196, %v1477
        %v1482 = vadd.f32 %v1197, %v1478
        %v1483 = vld [vmem:[%s20] sm:$0xf]
        %v1484 = vld [vmem:[%s20 + $0x4] sm:$0xf]
        %v1485 = vld [vmem:[%s20 + $0x8] sm:$0xf]
        %v1486 = vld [vmem:[%s20 + $0xc] sm:$0xf]
        %v1487 = vld [vmem:[%s20 + $0x10] sm:$0xf]
        %v1488 = vld [vmem:[%s20 + $0x14] sm:$0xf]
        %v1489 = vld [vmem:[%s20 + $0x18] sm:$0xf]
        %v1490 = vld [vmem:[%s20 + $0x1c] sm:$0xf]
        %v1491 = vld [vmem:[%s20 + $0x20] sm:$0xf]
        %v1492 = vld [vmem:[%s20 + $0x24] sm:$0xf]
        %v1493 = vld [vmem:[%s20 + $0x28] sm:$0xf]
        %v1494 = vld [vmem:[%s20 + $0x2c] sm:$0xf]
        %v1495 = vld [vmem:[%s20 + $0x30] sm:$0xf]
        %v1496 = vld [vmem:[%s20 + $0x34] sm:$0xf]
        %v1497 = vld [vmem:[%s20 + $0x38] sm:$0xf]
        %v1498 = vld [vmem:[%s20 + $0x3c] sm:$0xf]
        %v1499 = vld [vmem:[%s20 + $0x40] sm:$0xf]
        %v1500 = vld [vmem:[%s20 + $0x44] sm:$0xf]
        %v1501 = vld [vmem:[%s20 + $0x48] sm:$0xf]
        %v1502 = vld [vmem:[%s20 + $0x4c] sm:$0xf]
        %v1503 = vld [vmem:[%s20 + $0x50] sm:$0xf]
        %v1504 = vld [vmem:[%s20 + $0x54] sm:$0xf]
        %v1505 = vld [vmem:[%s20 + $0x58] sm:$0xf]
        %v1506 = vld [vmem:[%s20 + $0x5c] sm:$0xf]
        %v1507 = vld [vmem:[%s20 + $0x60] sm:$0xf]
        %v1508 = vld [vmem:[%s20 + $0x64] sm:$0xf]
        %v1509 = vld [vmem:[%s20 + $0x68] sm:$0xf]
        %v1510 = vld [vmem:[%s20 + $0x6c] sm:$0xf]
        %v1511 = vld [vmem:[%s20 + $0x70] sm:$0xf]
        %v1512 = vld [vmem:[%s20 + $0x74] sm:$0xf]
        %v1513 = vld [vmem:[%s20 + $0x78] sm:$0xf]
        %v1514 = vld [vmem:[%s20 + $0x7c] sm:$0xf]
        %v1515 = vld [vmem:[%s20 + $0x80] sm:$0xf]
        %v1516 = vld [vmem:[%s20 + $0x84] sm:$0xf]
        %v1517 = vld [vmem:[%s20 + $0x88] sm:$0xf]
        %v1518 = vld [vmem:[%s20 + $0x8c] sm:$0xf]
        %v1519 = vld [vmem:[%s20 + $0x90] sm:$0xf]
        %v1520 = vld [vmem:[%s20 + $0x94] sm:$0xf]
        %v1521 = vld [vmem:[%s20 + $0x98] sm:$0xf]
        %v1522 = vld [vmem:[%s20 + $0x9c] sm:$0xf]
        %v1523 = vld [vmem:[%s20 + $0xa0] sm:$0xf]
        %v1524 = vld [vmem:[%s20 + $0xa4] sm:$0xf]
        %v1525 = vld [vmem:[%s20 + $0xa8] sm:$0xf]
        %v1526 = vld [vmem:[%s20 + $0xac] sm:$0xf]
        %v1527 = vld [vmem:[%s20 + $0xb0] sm:$0xf]
        %v1528 = vld [vmem:[%s20 + $0xb4] sm:$0xf]
        %v1529 = vld [vmem:[%s20 + $0xb8] sm:$0xf]
        %v1530 = vld [vmem:[%s20 + $0xbc] sm:$0x3]
        %v1531 = vpack.c.bf16 %v1480, %v1479
        %v1532 = vpack.c.bf16 %v1482, %v1481
        %v1533 = vld [vmem:[%s21] sm:$0xff]
        %v1534 = vld [vmem:[%s21 + $0x8] sm:$0xff]
        %v1535 = vld [vmem:[%s21 + $0x10] sm:$0xff]
        %v1536 = vld [vmem:[%s21 + $0x18] sm:$0xff]
        %v1537 = vld [vmem:[%s21 + $0x20] sm:$0xff]
        %v1538 = vld [vmem:[%s21 + $0x28] sm:$0xff]
        %v1539 = vld [vmem:[%s21 + $0x30] sm:$0xff]
        %v1540 = vld [vmem:[%s21 + $0x38] sm:$0xff]
        %v1541 = vld [vmem:[%s21 + $0x40] sm:$0xff]
        %v1542 = vld [vmem:[%s21 + $0x48] sm:$0xff]
        %v1543 = vld [vmem:[%s21 + $0x50] sm:$0xff]
        %v1544 = vld [vmem:[%s21 + $0x58] sm:$0xff]
        %v1545 = vld [vmem:[%s21 + $0x60] sm:$0xff]
        %v1546 = vld [vmem:[%s21 + $0x68] sm:$0xff]
        %v1547 = vld [vmem:[%s21 + $0x70] sm:$0xff]
        %v1548 = vld [vmem:[%s21 + $0x78] sm:$0xff]
        %v1549 = vld [vmem:[%s21 + $0x80] sm:$0xff]
        %v1550 = vld [vmem:[%s21 + $0x88] sm:$0xff]
        %v1551 = vld [vmem:[%s21 + $0x90] sm:$0xff]
        %v1552 = vld [vmem:[%s21 + $0x98] sm:$0xff]
        %v1553 = vld [vmem:[%s21 + $0xa0] sm:$0xff]
        %v1554 = vld [vmem:[%s21 + $0xa8] sm:$0xff]
        %v1555 = vld [vmem:[%s21 + $0xb0] sm:$0xff]
        %v1556 = vld [vmem:[%s21 + $0xb8] sm:$0xff]
        %v1557 = vld [vmem:[%s21 + $0xc0] sm:$0xff]
        %v1558 = vld [vmem:[%s21 + $0xc8] sm:$0xff]
        %v1559 = vld [vmem:[%s21 + $0xd0] sm:$0xff]
        %v1560 = vld [vmem:[%s21 + $0xd8] sm:$0xff]
        %v1561 = vld [vmem:[%s21 + $0xe0] sm:$0xff]
        %v1562 = vld [vmem:[%s21 + $0xe8] sm:$0xff]
        %v1563 = vld [vmem:[%s21 + $0xf0] sm:$0xff]
        %v1564 = vld [vmem:[%s21 + $0xf8] sm:$0xff]
        %v1565 = vld [vmem:[%s21 + $0x100] sm:$0xff]
        %v1566 = vld [vmem:[%s21 + $0x108] sm:$0xff]
        %v1567 = vld [vmem:[%s21 + $0x110] sm:$0xff]
        %v1568 = vld [vmem:[%s21 + $0x118] sm:$0xff]
        %v1569 = vld [vmem:[%s21 + $0x120] sm:$0xff]
        %v1570 = vld [vmem:[%s21 + $0x128] sm:$0xff]
        %v1571 = vld [vmem:[%s21 + $0x130] sm:$0xff]
        %v1572 = vld [vmem:[%s21 + $0x138] sm:$0xff]
        %v1573 = vld [vmem:[%s21 + $0x140] sm:$0xff]
        %v1574 = vld [vmem:[%s21 + $0x148] sm:$0xff]
        %v1575 = vld [vmem:[%s21 + $0x150] sm:$0xff]
        %v1576 = vld [vmem:[%s21 + $0x158] sm:$0xff]
        %v1577 = vld [vmem:[%s21 + $0x160] sm:$0xff]
        %v1578 = vld [vmem:[%s21 + $0x168] sm:$0xff]
        %v1579 = vld [vmem:[%s21 + $0x170] sm:$0xff]
        %v1580 = vld [vmem:[%s21 + $0x178] sm:$0xf]
        %1582 = vset.pattern.permute.xlu0 0
        %1583 = vperm.xlu0 %1582, %v1533
        %v1584 = vpop.permute.xlu0 %1583
        %1587 = vset.pattern.permute.xlu0 0
        %1588 = vperm.xlu0 %1587, %v1534
        %v1589 = vpop.permute.xlu0 %1588
        %1592 = vset.pattern.permute.xlu0 0
        %1593 = vperm.xlu0 %1592, %v1535
        %v1594 = vpop.permute.xlu0 %1593
        %1597 = vset.pattern.permute.xlu0 0
        %1598 = vperm.xlu0 %1597, %v1536
        %v1599 = vpop.permute.xlu0 %1598
        %1602 = vset.pattern.permute.xlu0 0
        %1603 = vperm.xlu0 %1602, %v1537
        %v1604 = vpop.permute.xlu0 %1603
        %1607 = vset.pattern.permute.xlu0 0
        %1608 = vperm.xlu0 %1607, %v1538
        %v1609 = vpop.permute.xlu0 %1608
        %1612 = vset.pattern.permute.xlu0 0
        %1613 = vperm.xlu0 %1612, %v1539
        %v1614 = vpop.permute.xlu0 %1613
        %1617 = vset.pattern.permute.xlu0 0
        %1618 = vperm.xlu0 %1617, %v1540
        %v1619 = vpop.permute.xlu0 %1618
        %1622 = vset.pattern.permute.xlu0 0
        %1623 = vperm.xlu0 %1622, %v1541
        %v1624 = vpop.permute.xlu0 %1623
        %1627 = vset.pattern.permute.xlu0 0
        %1628 = vperm.xlu0 %1627, %v1542
        %v1629 = vpop.permute.xlu0 %1628
        %1632 = vset.pattern.permute.xlu0 0
        %1633 = vperm.xlu0 %1632, %v1543
        %v1634 = vpop.permute.xlu0 %1633
        %1637 = vset.pattern.permute.xlu0 0
        %1638 = vperm.xlu0 %1637, %v1544
        %v1639 = vpop.permute.xlu0 %1638
        %1642 = vset.pattern.permute.xlu0 0
        %1643 = vperm.xlu0 %1642, %v1545
        %v1644 = vpop.permute.xlu0 %1643
        %1647 = vset.pattern.permute.xlu0 0
        %1648 = vperm.xlu0 %1647, %v1546
        %v1649 = vpop.permute.xlu0 %1648
        %1652 = vset.pattern.permute.xlu0 0
        %1653 = vperm.xlu0 %1652, %v1547
        %v1654 = vpop.permute.xlu0 %1653
        %1657 = vset.pattern.permute.xlu0 0
        %1658 = vperm.xlu0 %1657, %v1548
        %v1659 = vpop.permute.xlu0 %1658
        %1662 = vset.pattern.permute.xlu0 0
        %1663 = vperm.xlu0 %1662, %v1549
        %v1664 = vpop.permute.xlu0 %1663
        %1667 = vset.pattern.permute.xlu0 0
        %1668 = vperm.xlu0 %1667, %v1550
        %v1669 = vpop.permute.xlu0 %1668
        %1672 = vset.pattern.permute.xlu0 0
        %1673 = vperm.xlu0 %1672, %v1551
        %v1674 = vpop.permute.xlu0 %1673
        %1677 = vset.pattern.permute.xlu0 0
        %1678 = vperm.xlu0 %1677, %v1552
        %v1679 = vpop.permute.xlu0 %1678
        %1682 = vset.pattern.permute.xlu0 0
        %1683 = vperm.xlu0 %1682, %v1553
        %v1684 = vpop.permute.xlu0 %1683
        %1687 = vset.pattern.permute.xlu0 0
        %1688 = vperm.xlu0 %1687, %v1554
        %v1689 = vpop.permute.xlu0 %1688
        %1692 = vset.pattern.permute.xlu0 0
        %1693 = vperm.xlu0 %1692, %v1555
        %v1694 = vpop.permute.xlu0 %1693
        %1697 = vset.pattern.permute.xlu0 0
        %1698 = vperm.xlu0 %1697, %v1556
        %v1699 = vpop.permute.xlu0 %1698
        %1702 = vset.pattern.permute.xlu0 0
        %1703 = vperm.xlu0 %1702, %v1557
        %v1704 = vpop.permute.xlu0 %1703
        %1707 = vset.pattern.permute.xlu0 0
        %1708 = vperm.xlu0 %1707, %v1558
        %v1709 = vpop.permute.xlu0 %1708
        %1712 = vset.pattern.permute.xlu0 0
        %1713 = vperm.xlu0 %1712, %v1559
        %v1714 = vpop.permute.xlu0 %1713
        %1717 = vset.pattern.permute.xlu0 0
        %1718 = vperm.xlu0 %1717, %v1560
        %v1719 = vpop.permute.xlu0 %1718
        %1722 = vset.pattern.permute.xlu0 0
        %1723 = vperm.xlu0 %1722, %v1561
        %v1724 = vpop.permute.xlu0 %1723
        %1727 = vset.pattern.permute.xlu0 0
        %1728 = vperm.xlu0 %1727, %v1562
        %v1729 = vpop.permute.xlu0 %1728
        %1732 = vset.pattern.permute.xlu0 0
        %1733 = vperm.xlu0 %1732, %v1563
        %v1734 = vpop.permute.xlu0 %1733
        %1737 = vset.pattern.permute.xlu0 0
        %1738 = vperm.xlu0 %1737, %v1564
        %v1739 = vpop.permute.xlu0 %1738
        %1742 = vset.pattern.permute.xlu0 0
        %1743 = vperm.xlu0 %1742, %v1565
        %v1744 = vpop.permute.xlu0 %1743
        %1747 = vset.pattern.permute.xlu0 0
        %1748 = vperm.xlu0 %1747, %v1566
        %v1749 = vpop.permute.xlu0 %1748
        %1752 = vset.pattern.permute.xlu0 0
        %1753 = vperm.xlu0 %1752, %v1567
        %v1754 = vpop.permute.xlu0 %1753
        %1757 = vset.pattern.permute.xlu0 0
        %1758 = vperm.xlu0 %1757, %v1568
        %v1759 = vpop.permute.xlu0 %1758
        %1762 = vset.pattern.permute.xlu0 0
        %1763 = vperm.xlu0 %1762, %v1569
        %v1764 = vpop.permute.xlu0 %1763
        %1767 = vset.pattern.permute.xlu0 0
        %1768 = vperm.xlu0 %1767, %v1570
        %v1769 = vpop.permute.xlu0 %1768
        %1772 = vset.pattern.permute.xlu0 0
        %1773 = vperm.xlu0 %1772, %v1571
        %v1774 = vpop.permute.xlu0 %1773
        %1777 = vset.pattern.permute.xlu0 0
        %1778 = vperm.xlu0 %1777, %v1572
        %v1779 = vpop.permute.xlu0 %1778
        %1782 = vset.pattern.permute.xlu0 0
        %1783 = vperm.xlu0 %1782, %v1573
        %v1784 = vpop.permute.xlu0 %1783
        %1787 = vset.pattern.permute.xlu0 0
        %1788 = vperm.xlu0 %1787, %v1574
        %v1789 = vpop.permute.xlu0 %1788
        %1792 = vset.pattern.permute.xlu0 0
        %1793 = vperm.xlu0 %1792, %v1575
        %v1794 = vpop.permute.xlu0 %1793
        %1797 = vset.pattern.permute.xlu0 0
        %1798 = vperm.xlu0 %1797, %v1576
        %v1799 = vpop.permute.xlu0 %1798
        %1802 = vset.pattern.permute.xlu0 0
        %1803 = vperm.xlu0 %1802, %v1577
        %v1804 = vpop.permute.xlu0 %1803
        %1807 = vset.pattern.permute.xlu0 0
        %1808 = vperm.xlu0 %1807, %v1578
        %v1809 = vpop.permute.xlu0 %1808
        %1812 = vset.pattern.permute.xlu0 0
        %1813 = vperm.xlu0 %1812, %v1579
        %v1814 = vpop.permute.xlu0 %1813
        %1817 = vset.pattern.permute.xlu0 0
        %1818 = vperm.xlu0 %1817, %v1580
        %v1819 = vpop.permute.xlu0 %1818
        %v1869 = vunpack.c.l.b16 %v1483
        %v1870 = vunpack.c.l.b16 %v1484
        %v1871 = vunpack.c.l.b16 %v1485
        %v1872 = vunpack.c.l.b16 %v1486
        %v1873 = vunpack.c.l.b16 %v1487
        %v1874 = vunpack.c.l.b16 %v1488
        %v1875 = vunpack.c.l.b16 %v1489
        %v1876 = vunpack.c.l.b16 %v1490
        %v1877 = vunpack.c.l.b16 %v1491
        %v1878 = vunpack.c.l.b16 %v1492
        %v1879 = vunpack.c.l.b16 %v1493
        %v1880 = vunpack.c.l.b16 %v1494
        %v1881 = vunpack.c.l.b16 %v1495
        %v1882 = vunpack.c.l.b16 %v1496
        %v1883 = vunpack.c.l.b16 %v1497
        %v1884 = vunpack.c.l.b16 %v1498
        %v1885 = vunpack.c.l.b16 %v1499
        %v1886 = vunpack.c.l.b16 %v1500
        %v1887 = vunpack.c.l.b16 %v1501
        %v1888 = vunpack.c.l.b16 %v1502
        %v1889 = vunpack.c.l.b16 %v1503
        %v1890 = vunpack.c.l.b16 %v1504
        %v1891 = vunpack.c.l.b16 %v1505
        %v1892 = vunpack.c.l.b16 %v1506
        %v1893 = vunpack.c.l.b16 %v1507
        %v1894 = vunpack.c.l.b16 %v1508
        %v1895 = vunpack.c.l.b16 %v1509
        %v1896 = vunpack.c.l.b16 %v1510
        %v1897 = vunpack.c.l.b16 %v1511
        %v1898 = vunpack.c.l.b16 %v1512
        %v1899 = vunpack.c.l.b16 %v1513
        %v1900 = vunpack.c.l.b16 %v1514
        %v1901 = vunpack.c.l.b16 %v1515
        %v1902 = vunpack.c.l.b16 %v1516
        %v1903 = vunpack.c.l.b16 %v1517
        %v1904 = vunpack.c.l.b16 %v1518
        %v1905 = vunpack.c.l.b16 %v1519
        %v1906 = vunpack.c.l.b16 %v1520
        %v1907 = vunpack.c.l.b16 %v1521
        %v1908 = vunpack.c.l.b16 %v1522
        %v1909 = vunpack.c.l.b16 %v1523
        %v1910 = vunpack.c.l.b16 %v1524
        %v1911 = vunpack.c.l.b16 %v1525
        %v1912 = vunpack.c.l.b16 %v1526
        %v1913 = vunpack.c.l.b16 %v1527
        %v1914 = vunpack.c.l.b16 %v1528
        %v1915 = vunpack.c.l.b16 %v1529
        %v1916 = vunpack.c.l.b16 %v1530
        %v1917 = vpack.c.b16 %v1870, %v1869
        %v1918 = vpack.c.b16 %v1872, %v1871
        %v1919 = vpack.c.b16 %v1874, %v1873
        %v1920 = vpack.c.b16 %v1876, %v1875
        %v1921 = vpack.c.b16 %v1878, %v1877
        %v1922 = vpack.c.b16 %v1880, %v1879
        %v1923 = vpack.c.b16 %v1882, %v1881
        %v1924 = vpack.c.b16 %v1884, %v1883
        %v1925 = vpack.c.b16 %v1886, %v1885
        %v1926 = vpack.c.b16 %v1888, %v1887
        %v1927 = vpack.c.b16 %v1890, %v1889
        %v1928 = vpack.c.b16 %v1892, %v1891
        %v1929 = vpack.c.b16 %v1894, %v1893
        %v1930 = vpack.c.b16 %v1896, %v1895
        %v1931 = vpack.c.b16 %v1898, %v1897
        %v1932 = vpack.c.b16 %v1900, %v1899
        %v1933 = vpack.c.b16 %v1902, %v1901
        %v1934 = vpack.c.b16 %v1904, %v1903
        %v1935 = vpack.c.b16 %v1906, %v1905
        %v1936 = vpack.c.b16 %v1908, %v1907
        %v1937 = vpack.c.b16 %v1910, %v1909
        %v1938 = vpack.c.b16 %v1912, %v1911
        %v1939 = vpack.c.b16 %v1914, %v1913
        %v1940 = vpack.c.b16 %v1916, %v1915
        %v1942 = vsel %vm855, %v1917, 0
        %v1945 = vsel %vm855, %v1918, 0
        %v1948 = vsel %vm855, %v1919, 0
        %v1951 = vsel %vm855, %v1920, 0
        %v1954 = vsel %vm855, %v1921, 0
        %v1957 = vsel %vm855, %v1922, 0
        %v1960 = vsel %vm855, %v1923, 0
        %v1963 = vsel %vm855, %v1924, 0
        %v1966 = vsel %vm855, %v1925, 0
        %v1969 = vsel %vm855, %v1926, 0
        %v1972 = vsel %vm855, %v1927, 0
        %v1975 = vsel %vm855, %v1928, 0
        %v1978 = vsel %vm855, %v1929, 0
        %v1981 = vsel %vm855, %v1930, 0
        %v1984 = vsel %vm855, %v1931, 0
        %v1987 = vsel %vm855, %v1932, 0
        %v1990 = vsel %vm855, %v1933, 0
        %v1993 = vsel %vm855, %v1934, 0
        %v1996 = vsel %vm855, %v1935, 0
        %v1999 = vsel %vm855, %v1936, 0
        %v2002 = vsel %vm855, %v1937, 0
        %v2005 = vsel %vm855, %v1938, 0
        %v2008 = vsel %vm855, %v1939, 0
        %v2011 = vsel %vm855, %v1940, 0
        %2013 = vmatpush.bf16.msra.mxu0 0
        %2014 = vmatpush.bf16.msra.mxu0 0
        %2015 = vmatpush.bf16.msra.mxu0 0
        %2016 = vmatpush.bf16.msra.mxu0 0
        %2017 = vmatpush.bf16.msra.mxu0 0
        %2018 = vmatpush.bf16.msra.mxu0 0
        %2019 = vmatpush.bf16.msra.mxu0 %v1532
        %2020 = vmatpush.bf16.msra.mxu0 %v1531
        %2021 = vmatmul.bf16.gmra.mxu0 %v1942
        %v2022 = vpop.f32.mrf.mxu0
        %v2023 = vadd.f32 %v1584, %v2022
        %v2024 = vpop.f32.mrf.mxu0
        %v2025 = vadd.f32 %v1589, %v2024
        %2026 = vmatmul.bf16.gmra.mxu0 %v1945
        %v2027 = vpop.f32.mrf.mxu0
        %v2028 = vadd.f32 %v1594, %v2027
        %v2029 = vpop.f32.mrf.mxu0
        %v2030 = vadd.f32 %v1599, %v2029
        %2031 = vmatmul.bf16.gmra.mxu0 %v1948
        %v2032 = vpop.f32.mrf.mxu0
        %v2033 = vadd.f32 %v1604, %v2032
        %v2034 = vpop.f32.mrf.mxu0
        %v2035 = vadd.f32 %v1609, %v2034
        %2036 = vmatmul.bf16.gmra.mxu0 %v1951
        %v2037 = vpop.f32.mrf.mxu0
        %v2038 = vadd.f32 %v1614, %v2037
        %v2039 = vpop.f32.mrf.mxu0
        %v2040 = vadd.f32 %v1619, %v2039
        %2041 = vmatmul.bf16.gmra.mxu0 %v1954
        %v2042 = vpop.f32.mrf.mxu0
        %v2043 = vadd.f32 %v1624, %v2042
        %v2044 = vpop.f32.mrf.mxu0
        %v2045 = vadd.f32 %v1629, %v2044
        %2046 = vmatmul.bf16.gmra.mxu0 %v1957
        %v2047 = vpop.f32.mrf.mxu0
        %v2048 = vadd.f32 %v1634, %v2047
        %v2049 = vpop.f32.mrf.mxu0
        %v2050 = vadd.f32 %v1639, %v2049
        %2051 = vmatmul.bf16.gmra.mxu0 %v1960
        %v2052 = vpop.f32.mrf.mxu0
        %v2053 = vadd.f32 %v1644, %v2052
        %v2054 = vpop.f32.mrf.mxu0
        %v2055 = vadd.f32 %v1649, %v2054
        %2056 = vmatmul.bf16.gmra.mxu0 %v1963
        %v2057 = vpop.f32.mrf.mxu0
        %v2058 = vadd.f32 %v1654, %v2057
        %v2059 = vpop.f32.mrf.mxu0
        %v2060 = vadd.f32 %v1659, %v2059
        %2061 = vmatmul.bf16.gmra.mxu0 %v1966
        %v2062 = vpop.f32.mrf.mxu0
        %v2063 = vadd.f32 %v1664, %v2062
        %v2064 = vpop.f32.mrf.mxu0
        %v2065 = vadd.f32 %v1669, %v2064
        %2066 = vmatmul.bf16.gmra.mxu0 %v1969
        %v2067 = vpop.f32.mrf.mxu0
        %v2068 = vadd.f32 %v1674, %v2067
        %v2069 = vpop.f32.mrf.mxu0
        %v2070 = vadd.f32 %v1679, %v2069
        %2071 = vmatmul.bf16.gmra.mxu0 %v1972
        %v2072 = vpop.f32.mrf.mxu0
        %v2073 = vadd.f32 %v1684, %v2072
        %v2074 = vpop.f32.mrf.mxu0
        %v2075 = vadd.f32 %v1689, %v2074
        %2076 = vmatmul.bf16.gmra.mxu0 %v1975
        %v2077 = vpop.f32.mrf.mxu0
        %v2078 = vadd.f32 %v1694, %v2077
        %v2079 = vpop.f32.mrf.mxu0
        %v2080 = vadd.f32 %v1699, %v2079
        %2081 = vmatmul.bf16.gmra.mxu0 %v1978
        %v2082 = vpop.f32.mrf.mxu0
        %v2083 = vadd.f32 %v1704, %v2082
        %v2084 = vpop.f32.mrf.mxu0
        %v2085 = vadd.f32 %v1709, %v2084
        %2086 = vmatmul.bf16.gmra.mxu0 %v1981
        %v2087 = vpop.f32.mrf.mxu0
        %v2088 = vadd.f32 %v1714, %v2087
        %v2089 = vpop.f32.mrf.mxu0
        %v2090 = vadd.f32 %v1719, %v2089
        %2091 = vmatmul.bf16.gmra.mxu0 %v1984
        %v2092 = vpop.f32.mrf.mxu0
        %v2093 = vadd.f32 %v1724, %v2092
        %v2094 = vpop.f32.mrf.mxu0
        %v2095 = vadd.f32 %v1729, %v2094
        %2096 = vmatmul.bf16.gmra.mxu0 %v1987
        %v2097 = vpop.f32.mrf.mxu0
        %v2098 = vadd.f32 %v1734, %v2097
        %v2099 = vpop.f32.mrf.mxu0
        %v2100 = vadd.f32 %v1739, %v2099
        %2101 = vmatmul.bf16.gmra.mxu0 %v1990
        %v2102 = vpop.f32.mrf.mxu0
        %v2103 = vadd.f32 %v1744, %v2102
        %v2104 = vpop.f32.mrf.mxu0
        %v2105 = vadd.f32 %v1749, %v2104
        %2106 = vmatmul.bf16.gmra.mxu0 %v1993
        %v2107 = vpop.f32.mrf.mxu0
        %v2108 = vadd.f32 %v1754, %v2107
        %v2109 = vpop.f32.mrf.mxu0
        %v2110 = vadd.f32 %v1759, %v2109
        %2111 = vmatmul.bf16.gmra.mxu0 %v1996
        %v2112 = vpop.f32.mrf.mxu0
        %v2113 = vadd.f32 %v1764, %v2112
        %v2114 = vpop.f32.mrf.mxu0
        %v2115 = vadd.f32 %v1769, %v2114
        %2116 = vmatmul.bf16.gmra.mxu0 %v1999
        %v2117 = vpop.f32.mrf.mxu0
        %v2118 = vadd.f32 %v1774, %v2117
        %v2119 = vpop.f32.mrf.mxu0
        %v2120 = vadd.f32 %v1779, %v2119
        %2121 = vmatmul.bf16.gmra.mxu0 %v2002
        %v2122 = vpop.f32.mrf.mxu0
        %v2123 = vadd.f32 %v1784, %v2122
        %v2124 = vpop.f32.mrf.mxu0
        %v2125 = vadd.f32 %v1789, %v2124
        %2126 = vmatmul.bf16.gmra.mxu0 %v2005
        %v2127 = vpop.f32.mrf.mxu0
        %v2128 = vadd.f32 %v1794, %v2127
        %v2129 = vpop.f32.mrf.mxu0
        %v2130 = vadd.f32 %v1799, %v2129
        %2131 = vmatmul.bf16.gmra.mxu0 %v2008
        %v2132 = vpop.f32.mrf.mxu0
        %v2133 = vadd.f32 %v1804, %v2132
        %v2134 = vpop.f32.mrf.mxu0
        %v2135 = vadd.f32 %v1809, %v2134
        %2136 = vmatmul.bf16.gmra.mxu0 %v2011
        %v2137 = vpop.f32.mrf.mxu0
        %v2138 = vadd.f32 %v1814, %v2137
        %v2139 = vpop.f32.mrf.mxu0
        %v2140 = vadd.f32 %v1819, %v2139
        %2141 = vdwg.mxu0
        %2142 = vst [vmem:[%s687] sm:$0xff] %v2023
        %2143 = vst [vmem:[%s687 + $0x8] sm:$0xff] %v2025
        %2144 = vst [vmem:[%s687 + $0x10] sm:$0xff] %v2028
        %2145 = vst [vmem:[%s687 + $0x18] sm:$0xff] %v2030
        %2146 = vst [vmem:[%s687 + $0x20] sm:$0xff] %v2033
        %2147 = vst [vmem:[%s687 + $0x28] sm:$0xff] %v2035
        %2148 = vst [vmem:[%s687 + $0x30] sm:$0xff] %v2038
        %2149 = vst [vmem:[%s687 + $0x38] sm:$0xff] %v2040
        %2150 = vst [vmem:[%s687 + $0x40] sm:$0xff] %v2043
        %2151 = vst [vmem:[%s687 + $0x48] sm:$0xff] %v2045
        %2152 = vst [vmem:[%s687 + $0x50] sm:$0xff] %v2048
        %2153 = vst [vmem:[%s687 + $0x58] sm:$0xff] %v2050
        %2154 = vst [vmem:[%s687 + $0x60] sm:$0xff] %v2053
        %2155 = vst [vmem:[%s687 + $0x68] sm:$0xff] %v2055
        %2156 = vst [vmem:[%s687 + $0x70] sm:$0xff] %v2058
        %2157 = vst [vmem:[%s687 + $0x78] sm:$0xff] %v2060
        %2158 = vst [vmem:[%s687 + $0x80] sm:$0xff] %v2063
        %2159 = vst [vmem:[%s687 + $0x88] sm:$0xff] %v2065
        %2160 = vst [vmem:[%s687 + $0x90] sm:$0xff] %v2068
        %2161 = vst [vmem:[%s687 + $0x98] sm:$0xff] %v2070
        %2162 = vst [vmem:[%s687 + $0xa0] sm:$0xff] %v2073
        %2163 = vst [vmem:[%s687 + $0xa8] sm:$0xff] %v2075
        %2164 = vst [vmem:[%s687 + $0xb0] sm:$0xff] %v2078
        %2165 = vst [vmem:[%s687 + $0xb8] sm:$0xff] %v2080
        %2166 = vst [vmem:[%s687 + $0xc0] sm:$0xff] %v2083
        %2167 = vst [vmem:[%s687 + $0xc8] sm:$0xff] %v2085
        %2168 = vst [vmem:[%s687 + $0xd0] sm:$0xff] %v2088
        %2169 = vst [vmem:[%s687 + $0xd8] sm:$0xff] %v2090
        %2170 = vst [vmem:[%s687 + $0xe0] sm:$0xff] %v2093
        %2171 = vst [vmem:[%s687 + $0xe8] sm:$0xff] %v2095
        %2172 = vst [vmem:[%s687 + $0xf0] sm:$0xff] %v2098
        %2173 = vst [vmem:[%s687 + $0xf8] sm:$0xff] %v2100
        %2174 = vst [vmem:[%s687 + $0x100] sm:$0xff] %v2103
        %2175 = vst [vmem:[%s687 + $0x108] sm:$0xff] %v2105
        %2176 = vst [vmem:[%s687 + $0x110] sm:$0xff] %v2108
        %2177 = vst [vmem:[%s687 + $0x118] sm:$0xff] %v2110
        %2178 = vst [vmem:[%s687 + $0x120] sm:$0xff] %v2113
        %2179 = vst [vmem:[%s687 + $0x128] sm:$0xff] %v2115
        %2180 = vst [vmem:[%s687 + $0x130] sm:$0xff] %v2118
        %2181 = vst [vmem:[%s687 + $0x138] sm:$0xff] %v2120
        %2182 = vst [vmem:[%s687 + $0x140] sm:$0xff] %v2123
        %2183 = vst [vmem:[%s687 + $0x148] sm:$0xff] %v2125
        %2184 = vst [vmem:[%s687 + $0x150] sm:$0xff] %v2128
        %2185 = vst [vmem:[%s687 + $0x158] sm:$0xff] %v2130
        %2186 = vst [vmem:[%s687 + $0x160] sm:$0xff] %v2133
        %2187 = vst [vmem:[%s687 + $0x168] sm:$0xff] %v2135
        %2188 = vst [vmem:[%s687 + $0x170] sm:$0xff] %v2138
        %2189 = vst [vmem:[%s687 + $0x178] sm:$0xf] %v2140
        %s2190 = sand.u32 %s516, 1
        %s2191 = scalar_lea.sflag [#allocation3], %s2190
        %s2192 = sand.u32 %s516, 1
        %s2193 = smul.addr %s2192, 384
        %s2194 = scalar_lea.vmem [#allocation2], %s2193
        // Predicated region
        $region109: #{tpu_custom_call.1} parent=107 // pred_check
          %p2195 = pneg %p526
        $region110: #{tpu_custom_call.1} parent=107 // pred_check_branch
          %2197 = sbr.rel (%p2195) target = $region112
        $region111: #{tpu_custom_call.1} parent=107 // pred_region
          %2199 = vsyncadd %s2191, 0
          %s2200 = smul.addr %s36, 8
          %s2201 = scalar_lea.hbm %s22, %s2200
          %s2202 = sshll.u32 %s2194, 4
          %s2203 = int_to_ptr.vmem [resolvable:$true] %s2202
          %s2204 = sshll.u32 %s2201, 4
          %s2205 = int_to_ptr.hbm [resolvable:$true] %s2204
          %2210 = dma.vmem_to_hbm [thread:$0]  %s2203, 6144, %s2205, %s2191, 128, 384, 8
        $region112: #{tpu_custom_call.1} parent=107 // pred_fallthru
          _
      $region108: #{tpu_custom_call.1} parent=5 // pred_fallthru
        _
      %p2211 = scmp.le.s32.totalorder 2, %s31
      // Predicated region
      $region113: #{tpu_custom_call.1} parent=5 // pred_check
        %p2212 = pneg %p2211
      $region114: #{tpu_custom_call.1} parent=5 // pred_check_branch
        %2214 = sbr.rel (%p2212) target = $region116
      $region115: #{tpu_custom_call.1} parent=5 // pred_region
        %s2215 = ssub.s32 %s31, 2
        // Predicated region
        $region117: #{tpu_custom_call.1} parent=115 // pred_check
          %p2216 = pneg %p532
        $region118: #{tpu_custom_call.1} parent=115 // pred_check_branch
          %2218 = sbr.rel (%p2216) target = $region120
        $region119: #{tpu_custom_call.1} parent=115 // pred_region
          %s2219 = sand.u32 %s517, 1
          %s2220 = scalar_lea.sflag [#allocation3], %s2219
          %s2221 = sand.u32 %s517, 1
          %s2222 = smul.addr %s2221, 384
          %s2223 = scalar_lea.vmem [#allocation2], %s2222
          %2225 = dma.done %s2220, 6144
        $region120: #{tpu_custom_call.1} parent=115 // pred_fallthru
          _
      $region116: #{tpu_custom_call.1} parent=5 // pred_fallthru
        _
    $region6: #{tpu_custom_call.1} parent=1 // loop_footer
      %s35 = sadd.s32 1, %s31
    $region7: #{tpu_custom_call.1} parent=1 // loop_footer_branch
      %30 = sbr.rel target = $region3
    $region8: #{tpu_custom_call.1} parent=1 // loop_exit
      _
    %2226 = vsyncpa [#allocation3], 1
    %s2227 = scalar_lea.sflag [#allocation3], 1
    %2228 = vsyncpa %s2227, 1

</llo_original>
